<compile_context>
chip_gen: v7x
topology: tpu7x:2x2x1
jax: 0.10.0
libtpu: 0.0.40
codegen_flags: <defaults>
</compile_context>

<pallas_src>
import jax
import jax.numpy as jnp
from jax.experimental import pallas as pl
from jax.experimental.pallas import tpu as pltpu


LANE = 128          # TPU lane width: feature dims are padded to this
OUT_LANES = 128     # lane-dense (1, 128) output row for the scalar readout
COMPUTE_DTYPE = jnp.bfloat16


def _pad2(x, rows, cols):
    r, c = x.shape
    return jnp.pad(x, ((0, rows - r), (0, cols - c)))


def _round_up(v, m):
    return ((v + m - 1) // m) * m


# ---------------------------------------------------------------------------
# Fused GCN forward
# ---------------------------------------------------------------------------
def gcn_forward_fused(a_hat, x, params, *, tm=None, tk=None, a_resident=None):
    """relu(A@(X@W1)+b1) -> relu(A@(.@W2)+b2) -> mean_nodes -> Linear(h,1)."""
    n = a_hat.shape[0]
    in_feats = x.shape[1]
    h_feats = params["w1"].shape[1]

    cdtype = COMPUTE_DTYPE
    cb = jnp.dtype(cdtype).itemsize

    assert n % 8 == 0, "pad the graph to a multiple of 8 nodes"

    # ---- A_hat residency decision + tile sizes --------------------------------
    if a_resident is None:
        # Resident bf16 A_hat next to the bf16 XW/H1 scratch: stay well under
        # the smallest physical VMEM (v7x, 64 MiB).
        a_resident = (n * n * cb) <= (16 << 20)

    if a_resident:
        tk = n                                    # single reduction step, A read once
        if tm is None:
            tm = n if n <= 256 else 256
    else:
        if tm is None:
            tm = n if n <= 256 else 256
        if tk is None:
            tk = n if n <= 2048 else 2048         # large tiles: not step-overhead bound

    assert n % tm == 0 and n % tk == 0
    # bf16 packs 16 rows per (8,128) vreg: dynamic row offsets into the bf16
    # scratch must be 16-aligned (trivially 0 when the tile spans the array).
    assert tm == n or tm % 16 == 0
    assert tk == n or tk % 128 == 0, "A tile lane dim must be 128-aligned or full"
    nr, nk = n // tm, n // tk

    # ---- lane-dense zero padding of the feature dims --------------------------
    f_pad = _round_up(in_feats, LANE)
    h_pad = _round_up(h_feats, LANE)

    a_p = a_hat.astype(cdtype)
    x_p = _pad2(x, n, f_pad).astype(cdtype)
    w1_p = _pad2(params["w1"], f_pad, h_pad).astype(cdtype)
    w2_p = _pad2(params["w2"], h_pad, h_pad).astype(cdtype)
    b1_p = _pad2(params["b1"], 1, h_pad).astype(jnp.float32)
    b2_p = _pad2(params["b2"], 1, h_pad).astype(jnp.float32)
    wd_p = _pad2(params["wd"].T, 1, h_pad).astype(jnp.float32)  # lane-wise reduce
    bd = params["bd"].astype(jnp.float32)                       # (1, 1) scalar -> SMEM

    inv_n = 1.0 / float(n)

    def kernel(a_ref, x_ref, w1_ref, b1_ref, w2_ref, b2_ref, wd_ref, bd_ref,
               o_ref, xw_ref, h1_ref, acc_ref, sum_ref):
        layer = pl.program_id(0)
        r = pl.program_id(1)
        k = pl.program_id(2)
        r0 = pl.multiple_of(r * tm, tm)
        k0 = pl.multiple_of(k * tk, tk)

        # -- zero the H2 column-sum once at the very first grid step ------------
        @pl.when((layer == 0) & (r == 0) & (k == 0))
        def _():
            sum_ref[...] = jnp.zeros_like(sum_ref)

        # -- XW fill folded into the k loop (first row-tile pass of each layer) -
        @pl.when(r == 0)
        def _():
            @pl.when(layer == 0)
            def _():
                xw_ref[pl.ds(k0, tk), :] = jnp.dot(
                    x_ref[pl.ds(k0, tk), :], w1_ref[...],
                    preferred_element_type=jnp.float32).astype(cdtype)

            @pl.when(layer == 1)
            def _():
                xw_ref[pl.ds(k0, tk), :] = jnp.dot(
                    h1_ref[pl.ds(k0, tk), :], w2_ref[...],
                    preferred_element_type=jnp.float32).astype(cdtype)

        # -- accumulate A[r, k] @ XW[k] (bf16 MXU, f32 accumulator) --------------
        @pl.when(k == 0)
        def _():
            acc_ref[...] = jnp.zeros_like(acc_ref)

        if a_resident:
            a_tile = a_ref[pl.ds(r0, tm), :]      # nk == 1: full lane extent
        else:
            a_tile = a_ref[...]
        acc_ref[...] += jnp.dot(a_tile, xw_ref[pl.ds(k0, tk), :],
                                preferred_element_type=jnp.float32)

        # -- finalize row tile on last k: bias + relu, then layer epilogue ------
        @pl.when(k == nk - 1)
        def _():
            @pl.when(layer == 0)
            def _():
                h = jnp.maximum(acc_ref[...] + b1_ref[...], 0.0)
                h1_ref[pl.ds(r0, tm), :] = h.astype(cdtype)   # H1 stays in VMEM

            @pl.when(layer == 1)
            def _():
                h = jnp.maximum(acc_ref[...] + b2_ref[...], 0.0)
                sum_ref[...] += jnp.sum(h, axis=0, keepdims=True)

                # readout folded into the very last grid step
                @pl.when(r == nr - 1)
                def _():
                    mean_h = sum_ref[...] * inv_n                      # (1, h_pad)
                    y = (jnp.sum(mean_h * wd_ref[...], axis=-1,
                                 keepdims=True) + bd_ref[0, 0])        # (1, 1)
                    o_ref[...] = jnp.broadcast_to(y, o_ref.shape)      # lane-dense

    if a_resident:
        a_spec = pl.BlockSpec((n, n), lambda l, r, k: (0, 0))          # DMA'd once
    else:
        a_spec = pl.BlockSpec((tm, tk), lambda l, r, k: (r, k))        # streamed tiles

    # ---- scoped VMEM sized to the actual residency plan (+ headroom) ----------
    est = (
        2 * n * h_pad * cb                                   # XW + H1 scratch (bf16)
        + tm * h_pad * 4                                     # f32 accumulator
        + 8 * h_pad * 4                                      # running column sum
        + (n * n * cb if a_resident else 2 * tm * tk * cb)   # A (resident / 2 bufs)
        + n * f_pad * cb                                     # X (resident)
        + (f_pad + h_pad) * h_pad * cb                       # W1, W2
        + 4 * 8 * h_pad * 4                                  # b1, b2, WdT rows
    )
    vmem_limit = int(min(100 << 20, max(2 * est + (2 << 20), 16 << 20)))

    grid = (2, nr, nk)   # (layer, row tile, reduction tile) -- reduction innermost

    out = pl.pallas_call(
        kernel,
        out_shape=jax.ShapeDtypeStruct((1, OUT_LANES), jnp.float32),
        grid=grid,
        in_specs=[
            a_spec,                                                  # A_hat
            pl.BlockSpec((n, f_pad), lambda l, r, k: (0, 0)),        # X (resident)
            pl.BlockSpec((f_pad, h_pad), lambda l, r, k: (0, 0)),    # W1
            pl.BlockSpec((1, h_pad), lambda l, r, k: (0, 0)),        # b1
            pl.BlockSpec((h_pad, h_pad), lambda l, r, k: (0, 0)),    # W2
            pl.BlockSpec((1, h_pad), lambda l, r, k: (0, 0)),        # b2
            pl.BlockSpec((1, h_pad), lambda l, r, k: (0, 0)),        # Wd^T (row)
            pl.BlockSpec(memory_space=pltpu.MemorySpace.SMEM),       # bd (scalar)
        ],
        out_specs=pl.BlockSpec((1, OUT_LANES), lambda l, r, k: (0, 0)),
        scratch_shapes=[
            pltpu.VMEM((n, h_pad), cdtype),        # XW1 (layer 0) / H1@W2 (layer 1)
            pltpu.VMEM((n, h_pad), cdtype),        # H1 (output of layer 0)
            pltpu.VMEM((tm, h_pad), jnp.float32),  # per-row-tile f32 accumulator
            pltpu.VMEM((1, h_pad), jnp.float32),   # running column-sum of H2
        ],
        compiler_params=pltpu.CompilerParams(
            # layer & row axes must run in order (all of H1 is needed before
            # layer 1 starts); k is the reduction axis.
            dimension_semantics=("arbitrary", "arbitrary", "arbitrary"),
            vmem_limit_bytes=vmem_limit,
        ),
    )(a_p, x_p, w1_p, b1_p, w2_p, b2_p, wd_p, bd)

    return out[0, 0]   # scalar: single-graph mean_nodes + Linear(h,1) + squeeze


# ---------------------------------------------------------------------------
# Parameter / input construction (deterministic)
# ---------------------------------------------------------------------------
def init_params(key, in_feats, h_feats):
    k1, k2, k3 = jax.random.split(key, 3)
    return {
        "w1": jax.random.normal(k1, (in_feats, h_feats), jnp.float32) * 0.1,
        "b1": jnp.zeros((1, h_feats), jnp.float32),
        "w2": jax.random.normal(k2, (h_feats, h_feats), jnp.float32) * 0.1,
        "b2": jnp.zeros((1, h_feats), jnp.float32),
        "wd": jax.random.normal(k3, (h_feats, 1), jnp.float32) * 0.1,
        "bd": jnp.zeros((1, 1), jnp.float32),
    }


def build_normalized_adjacency(key, n_nodes):
    # Deterministic random undirected graph with self-loops (avoids 0-degree),
    # then A_hat = D^{-1/2} A D^{-1/2}  (DGL GraphConv norm='both').
    probs = jax.random.uniform(key, (n_nodes, n_nodes))
    adj = (probs + probs.T > 1.0).astype(jnp.float32)
    adj = adj + jnp.eye(n_nodes, dtype=jnp.float32)
    adj = jnp.minimum(adj, 1.0)
    deg = jnp.sum(adj, axis=1)
    d_inv_sqrt = 1.0 / jnp.sqrt(deg)
    return adj * d_inv_sqrt[:, None] * d_inv_sqrt[None, :]


if __name__ == "__main__":
    N_NODES, IN_FEATS, H_FEATS = 256, 8, 32

    key = jax.random.PRNGKey(0)
    k_graph, k_feat, k_param = jax.random.split(key, 3)

    a_hat = build_normalized_adjacency(k_graph, N_NODES)
    x = jax.random.normal(k_feat, (N_NODES, IN_FEATS), jnp.float32)
    params = init_params(k_param, IN_FEATS, H_FEATS)

    # Path 1: resident A_hat (DMA'd once), 4 row tiles per layer.
    out_res = gcn_forward_fused(a_hat, x, params, tm=64)
    # Path 2: streamed A tiles with a real reduction axis (nr=4, nk=2).
    out_str = gcn_forward_fused(a_hat, x, params, tm=64, tk=128, a_resident=False)
    out_res, out_str = jax.block_until_ready((out_res, out_str))

    # bf16-emulated reference (same cast points as the kernel)
    bf = lambda v: v.astype(jnp.bfloat16)
    xw1 = jnp.dot(bf(x), bf(params["w1"]), preferred_element_type=jnp.float32)
    h1 = jnp.maximum(jnp.dot(bf(a_hat), bf(xw1), preferred_element_type=jnp.float32)
                     + params["b1"], 0.0)
    xw2 = jnp.dot(bf(h1), bf(params["w2"]), preferred_element_type=jnp.float32)
    h2 = jnp.maximum(jnp.dot(bf(a_hat), bf(xw2), preferred_element_type=jnp.float32)
                     + params["b2"], 0.0)
    ref_bf = jnp.squeeze(jnp.mean(h2, axis=0, keepdims=True) @ params["wd"]
                         + params["bd"])

    # pure-f32 reference (original module semantics); bf16 compute => looser tol
    rh = jnp.maximum(a_hat @ (x @ params["w1"]) + params["b1"], 0.0)
    rh = jnp.maximum(a_hat @ (rh @ params["w2"]) + params["b2"], 0.0)
    ref_f32 = jnp.squeeze(jnp.mean(rh, axis=0, keepdims=True) @ params["wd"]
                          + params["bd"])

    for out in (out_res, out_str):
        assert out.shape == (), f"expected scalar, got {out.shape}"
        assert jnp.allclose(out, ref_bf, atol=3e-3, rtol=3e-2), (out, ref_bf)
        assert jnp.allclose(out, ref_f32, atol=3e-2, rtol=2e-1), (out, ref_f32)

    print("KERNEL_OK")
</pallas_src>

<mosaic_0001>
module attributes {stable_mosaic.version = 11 : i64} {
  func.func @kernel(%arg0: i32, %arg1: i32, %arg2: i32, %arg3: memref<256x256xbf16, #tpu.memory_space<vmem>>, %arg4: memref<256x128xbf16, #tpu.memory_space<vmem>>, %arg5: memref<128x128xbf16, #tpu.memory_space<vmem>>, %arg6: memref<1x128xf32, #tpu.memory_space<vmem>>, %arg7: memref<128x128xbf16, #tpu.memory_space<vmem>>, %arg8: memref<1x128xf32, #tpu.memory_space<vmem>>, %arg9: memref<1x128xf32, #tpu.memory_space<vmem>>, %arg10: memref<1x1xf32, #tpu.memory_space<smem>>, %arg11: memref<1x128xf32, #tpu.memory_space<vmem>>, %arg12: memref<256x128xbf16, #tpu.memory_space<vmem>>, %arg13: memref<256x128xbf16, #tpu.memory_space<vmem>>, %arg14: memref<64x128xf32, #tpu.memory_space<vmem>>, %arg15: memref<1x128xf32, #tpu.memory_space<vmem>>) attributes {dimension_semantics = [#tpu.dimension_semantics<arbitrary>, #tpu.dimension_semantics<arbitrary>, #tpu.dimension_semantics<arbitrary>], iteration_bounds = array<i64: 2, 4, 1>, scalar_prefetch = 0 : i64, scratch_operands = 4 : i64, tpu.core_type = #tpu.core_type<tc>, window_params = [{pipeline_mode = #tpu.pipeline_mode<synchronous>, transform_indices = @transform_0, window_bounds = array<i64: 256, 256>}, {pipeline_mode = #tpu.pipeline_mode<synchronous>, transform_indices = @transform_1, window_bounds = array<i64: 256, 128>}, {pipeline_mode = #tpu.pipeline_mode<synchronous>, transform_indices = @transform_2, window_bounds = array<i64: 128, 128>}, {pipeline_mode = #tpu.pipeline_mode<synchronous>, transform_indices = @transform_3, window_bounds = array<i64: 1, 128>}, {pipeline_mode = #tpu.pipeline_mode<synchronous>, transform_indices = @transform_4, window_bounds = array<i64: 128, 128>}, {pipeline_mode = #tpu.pipeline_mode<synchronous>, transform_indices = @transform_5, window_bounds = array<i64: 1, 128>}, {pipeline_mode = #tpu.pipeline_mode<synchronous>, transform_indices = @transform_6, window_bounds = array<i64: 1, 128>}, {transform_indices = @transform_7, window_bounds = array<i64: 1, 1>}, {pipeline_mode = #tpu.pipeline_mode<synchronous>, transform_indices = @transform_8, window_bounds = array<i64: 1, 128>}]} {
    %c64_i32 = arith.constant 64 : i32
    %0 = arith.muli %arg1, %c64_i32 : i32
    %1 = tpu.assume_multiple %0, 64 : i32
    %c256_i32 = arith.constant 256 : i32
    %2 = arith.muli %arg2, %c256_i32 : i32
    %3 = tpu.assume_multiple %2, 256 : i32
    %c0_i32 = arith.constant 0 : i32
    %4 = arith.cmpi eq, %arg0, %c0_i32 : i32
    %c0_i32_0 = arith.constant 0 : i32
    %5 = arith.cmpi eq, %arg1, %c0_i32_0 : i32
    %6 = arith.andi %4, %5 : i1
    %c0_i32_1 = arith.constant 0 : i32
    %7 = arith.cmpi eq, %arg2, %c0_i32_1 : i32
    %8 = arith.andi %6, %7 : i1
    %9 = arith.extui %8 : i1 to i32
    %c0_i32_2 = arith.constant 0 : i32
    %10 = arith.cmpi ne, %9, %c0_i32_2 : i32
    scf.if %10 {
      %cst_14 = arith.constant 0.000000e+00 : f32
      %28 = vector.broadcast %cst_14 : f32 to vector<1x128xf32>
      %c0_15 = arith.constant 0 : index
      %c0_16 = arith.constant 0 : index
      %29 = vector.load %arg15[%c0_15, %c0_16] : memref<1x128xf32, #tpu.memory_space<vmem>>, vector<1x128xf32>
      tpu.vector_store %arg15[%c0_15, %c0_16], %28 {strides = array<i32>} : memref<1x128xf32, #tpu.memory_space<vmem>>, vector<1x128xf32>,
    } else {
    }
    %c0_i32_3 = arith.constant 0 : i32
    %11 = arith.cmpi eq, %arg1, %c0_i32_3 : i32
    %12 = arith.extui %11 : i1 to i32
    %c0_i32_4 = arith.constant 0 : i32
    %13 = arith.cmpi ne, %12, %c0_i32_4 : i32
    scf.if %13 {
      %c0_i32_14 = arith.constant 0 : i32
      %28 = arith.cmpi eq, %arg0, %c0_i32_14 : i32
      %29 = arith.extui %28 : i1 to i32
      %c0_i32_15 = arith.constant 0 : i32
      %30 = arith.cmpi ne, %29, %c0_i32_15 : i32
      scf.if %30 {
        %34 = arith.index_cast %3 : i32 to index
        %c0_17 = arith.constant 0 : index
        %35 = vector.load %arg4[%34, %c0_17] : memref<256x128xbf16, #tpu.memory_space<vmem>>, vector<256x128xbf16>
        %c0_18 = arith.constant 0 : index
        %c0_19 = arith.constant 0 : index
        %36 = vector.load %arg5[%c0_18, %c0_19] : memref<128x128xbf16, #tpu.memory_space<vmem>>, vector<128x128xbf16>
        %cst_20 = arith.constant dense<0.000000e+00> : vector<256x128xf32>
        %37 = tpu.matmul %35, %36, %cst_20 {dimension_numbers = #tpu.dot_dimension_numbers<[1], [0], [0], [1], [0, 0, 1, 1], [], []>} : vector<256x128xbf16>, vector<128x128xbf16>, vector<256x128xf32> -> vector<256x128xf32>
        %38 = arith.truncf %37 : vector<256x128xf32> to vector<256x128xbf16>
        %39 = arith.index_cast %3 : i32 to index
        %c0_21 = arith.constant 0 : index
        %40 = vector.load %arg12[%39, %c0_21] : memref<256x128xbf16, #tpu.memory_space<vmem>>, vector<256x128xbf16>
        tpu.vector_store %arg12[%39, %c0_21], %38 {strides = array<i32>} : memref<256x128xbf16, #tpu.memory_space<vmem>>, vector<256x128xbf16>,
      } else {
      }
      %c1_i32 = arith.constant 1 : i32
      %31 = arith.cmpi eq, %arg0, %c1_i32 : i32
      %32 = arith.extui %31 : i1 to i32
      %c0_i32_16 = arith.constant 0 : i32
      %33 = arith.cmpi ne, %32, %c0_i32_16 : i32
      scf.if %33 {
        %34 = arith.index_cast %3 : i32 to index
        %c0_17 = arith.constant 0 : index
        %35 = vector.load %arg13[%34, %c0_17] : memref<256x128xbf16, #tpu.memory_space<vmem>>, vector<256x128xbf16>
        %c0_18 = arith.constant 0 : index
        %c0_19 = arith.constant 0 : index
        %36 = vector.load %arg7[%c0_18, %c0_19] : memref<128x128xbf16, #tpu.memory_space<vmem>>, vector<128x128xbf16>
        %cst_20 = arith.constant dense<0.000000e+00> : vector<256x128xf32>
        %37 = tpu.matmul %35, %36, %cst_20 {dimension_numbers = #tpu.dot_dimension_numbers<[1], [0], [0], [1], [0, 0, 1, 1], [], []>} : vector<256x128xbf16>, vector<128x128xbf16>, vector<256x128xf32> -> vector<256x128xf32>
        %38 = arith.truncf %37 : vector<256x128xf32> to vector<256x128xbf16>
        %39 = arith.index_cast %3 : i32 to index
        %c0_21 = arith.constant 0 : index
        %40 = vector.load %arg12[%39, %c0_21] : memref<256x128xbf16, #tpu.memory_space<vmem>>, vector<256x128xbf16>
        tpu.vector_store %arg12[%39, %c0_21], %38 {strides = array<i32>} : memref<256x128xbf16, #tpu.memory_space<vmem>>, vector<256x128xbf16>,
      } else {
      }
    } else {
    }
    %c0_i32_5 = arith.constant 0 : i32
    %14 = arith.cmpi eq, %arg2, %c0_i32_5 : i32
    %15 = arith.extui %14 : i1 to i32
    %c0_i32_6 = arith.constant 0 : i32
    %16 = arith.cmpi ne, %15, %c0_i32_6 : i32
    scf.if %16 {
      %cst_14 = arith.constant 0.000000e+00 : f32
      %28 = vector.broadcast %cst_14 : f32 to vector<64x128xf32>
      %c0_15 = arith.constant 0 : index
      %c0_16 = arith.constant 0 : index
      %29 = vector.load %arg14[%c0_15, %c0_16] : memref<64x128xf32, #tpu.memory_space<vmem>>, vector<64x128xf32>
      tpu.vector_store %arg14[%c0_15, %c0_16], %28 {strides = array<i32>} : memref<64x128xf32, #tpu.memory_space<vmem>>, vector<64x128xf32>,
    } else {
    }
    %17 = arith.index_cast %1 : i32 to index
    %c0 = arith.constant 0 : index
    %18 = vector.load %arg3[%17, %c0] : memref<256x256xbf16, #tpu.memory_space<vmem>>, vector<64x256xbf16>
    %c0_7 = arith.constant 0 : index
    %c0_8 = arith.constant 0 : index
    %19 = vector.load %arg14[%c0_7, %c0_8] : memref<64x128xf32, #tpu.memory_space<vmem>>, vector<64x128xf32>
    %20 = arith.index_cast %3 : i32 to index
    %c0_9 = arith.constant 0 : index
    %21 = vector.load %arg12[%20, %c0_9] : memref<256x128xbf16, #tpu.memory_space<vmem>>, vector<256x128xbf16>
    %cst = arith.constant dense<0.000000e+00> : vector<64x128xf32>
    %22 = tpu.matmul %18, %21, %cst {dimension_numbers = #tpu.dot_dimension_numbers<[1], [0], [0], [1], [0, 0, 1, 1], [], []>} : vector<64x256xbf16>, vector<256x128xbf16>, vector<64x128xf32> -> vector<64x128xf32>
    %23 = arith.addf %19, %22 : vector<64x128xf32>
    %c0_10 = arith.constant 0 : index
    %c0_11 = arith.constant 0 : index
    %24 = vector.load %arg14[%c0_10, %c0_11] : memref<64x128xf32, #tpu.memory_space<vmem>>, vector<64x128xf32>
    tpu.vector_store %arg14[%c0_10, %c0_11], %23 {strides = array<i32>} : memref<64x128xf32, #tpu.memory_space<vmem>>, vector<64x128xf32>,
    %c0_i32_12 = arith.constant 0 : i32
    %25 = arith.cmpi eq, %arg2, %c0_i32_12 : i32
    %26 = arith.extui %25 : i1 to i32
    %c0_i32_13 = arith.constant 0 : i32
    %27 = arith.cmpi ne, %26, %c0_i32_13 : i32
    scf.if %27 {
      %c0_i32_14 = arith.constant 0 : i32
      %28 = arith.cmpi eq, %arg0, %c0_i32_14 : i32
      %29 = arith.extui %28 : i1 to i32
      %c0_i32_15 = arith.constant 0 : i32
      %30 = arith.cmpi ne, %29, %c0_i32_15 : i32
      scf.if %30 {
        %c0_17 = arith.constant 0 : index
        %c0_18 = arith.constant 0 : index
        %34 = vector.load %arg14[%c0_17, %c0_18] : memref<64x128xf32, #tpu.memory_space<vmem>>, vector<64x128xf32>
        %c0_19 = arith.constant 0 : index
        %c0_20 = arith.constant 0 : index
        %35 = vector.load %arg6[%c0_19, %c0_20] : memref<1x128xf32, #tpu.memory_space<vmem>>, vector<1x128xf32>
        %36 = vector.broadcast %35 : vector<1x128xf32> to vector<64x128xf32>
        %37 = arith.addf %34, %36 : vector<64x128xf32>
        %cst_21 = arith.constant 0.000000e+00 : f32
        %38 = vector.broadcast %cst_21 : f32 to vector<64x128xf32>
        %39 = arith.maximumf %37, %38 : vector<64x128xf32>
        %40 = arith.truncf %39 : vector<64x128xf32> to vector<64x128xbf16>
        %41 = arith.index_cast %1 : i32 to index
        %c0_22 = arith.constant 0 : index
        %42 = vector.load %arg13[%41, %c0_22] : memref<256x128xbf16, #tpu.memory_space<vmem>>, vector<64x128xbf16>
        tpu.vector_store %arg13[%41, %c0_22], %40 {strides = array<i32>} : memref<256x128xbf16, #tpu.memory_space<vmem>>, vector<64x128xbf16>,
      } else {
      }
      %c1_i32 = arith.constant 1 : i32
      %31 = arith.cmpi eq, %arg0, %c1_i32 : i32
      %32 = arith.extui %31 : i1 to i32
      %c0_i32_16 = arith.constant 0 : i32
      %33 = arith.cmpi ne, %32, %c0_i32_16 : i32
      scf.if %33 {
        %c0_17 = arith.constant 0 : index
        %c0_18 = arith.constant 0 : index
        %34 = vector.load %arg14[%c0_17, %c0_18] : memref<64x128xf32, #tpu.memory_space<vmem>>, vector<64x128xf32>
        %c0_19 = arith.constant 0 : index
        %c0_20 = arith.constant 0 : index
        %35 = vector.load %arg8[%c0_19, %c0_20] : memref<1x128xf32, #tpu.memory_space<vmem>>, vector<1x128xf32>
        %36 = vector.broadcast %35 : vector<1x128xf32> to vector<64x128xf32>
        %37 = arith.addf %34, %36 : vector<64x128xf32>
        %cst_21 = arith.constant 0.000000e+00 : f32
        %38 = vector.broadcast %cst_21 : f32 to vector<64x128xf32>
        %39 = arith.maximumf %37, %38 : vector<64x128xf32>
        %c0_22 = arith.constant 0 : index
        %c0_23 = arith.constant 0 : index
        %40 = vector.load %arg15[%c0_22, %c0_23] : memref<1x128xf32, #tpu.memory_space<vmem>>, vector<1x128xf32>
        %cst_24 = arith.constant dense<0.000000e+00> : vector<128xf32>
        %41 = vector.multi_reduction <add>, %39, %cst_24 [0] : vector<64x128xf32> to vector<128xf32>
        %42 = vector.shape_cast %41 : vector<128xf32> to vector<1x128xf32>
        %43 = arith.addf %40, %42 : vector<1x128xf32>
        %c0_25 = arith.constant 0 : index
        %c0_26 = arith.constant 0 : index
        %44 = vector.load %arg15[%c0_25, %c0_26] : memref<1x128xf32, #tpu.memory_space<vmem>>, vector<1x128xf32>
        tpu.vector_store %arg15[%c0_25, %c0_26], %43 {strides = array<i32>} : memref<1x128xf32, #tpu.memory_space<vmem>>, vector<1x128xf32>,
        %c3_i32 = arith.constant 3 : i32
        %45 = arith.cmpi eq, %arg1, %c3_i32 : i32
        %46 = arith.extui %45 : i1 to i32
        %c0_i32_27 = arith.constant 0 : i32
        %47 = arith.cmpi ne, %46, %c0_i32_27 : i32
        scf.if %47 {
          %c0_28 = arith.constant 0 : index
          %c0_29 = arith.constant 0 : index
          %48 = vector.load %arg15[%c0_28, %c0_29] : memref<1x128xf32, #tpu.memory_space<vmem>>, vector<1x128xf32>
          %cst_30 = arith.constant 3.906250e-03 : f32
          %49 = vector.broadcast %cst_30 : f32 to vector<1x128xf32>
          %50 = arith.mulf %48, %49 : vector<1x128xf32>
          %c0_31 = arith.constant 0 : index
          %c0_32 = arith.constant 0 : index
          %51 = vector.load %arg9[%c0_31, %c0_32] : memref<1x128xf32, #tpu.memory_space<vmem>>, vector<1x128xf32>
          %52 = arith.mulf %50, %51 : vector<1x128xf32>
          %cst_33 = arith.constant dense<0.000000e+00> : vector<1xf32>
          %53 = vector.multi_reduction <add>, %52, %cst_33 [1] : vector<1x128xf32> to vector<1xf32>
          %54 = vector.shape_cast %53 : vector<1xf32> to vector<1x1xf32>
          %c0_34 = arith.constant 0 : index
          %c0_35 = arith.constant 0 : index
          %55 = memref.load %arg10[%c0_34, %c0_35] : memref<1x1xf32, #tpu.memory_space<smem>>
          %56 = vector.broadcast %55 : f32 to vector<1x1xf32>
          %57 = arith.addf %54, %56 : vector<1x1xf32>
          %58 = vector.shape_cast %57 : vector<1x1xf32> to vector<1x1xf32>
          %59 = vector.broadcast %58 : vector<1x1xf32> to vector<1x128xf32>
          %c0_36 = arith.constant 0 : index
          %c0_37 = arith.constant 0 : index
          %60 = vector.load %arg11[%c0_36, %c0_37] : memref<1x128xf32, #tpu.memory_space<vmem>>, vector<1x128xf32>
          tpu.vector_store %arg11[%c0_36, %c0_37], %59 {strides = array<i32>} : memref<1x128xf32, #tpu.memory_space<vmem>>, vector<1x128xf32>,
        } else {
        }
      } else {
      }
    } else {
    }
    return
  }
  func.func @transform_0(%arg0: i32, %arg1: i32, %arg2: i32) -> (i32, i32) {
    %c0_i32 = arith.constant 0 : i32
    %c0_i32_0 = arith.constant 0 : i32
    %c0_i32_1 = arith.constant 0 : i32
    return %c0_i32, %c0_i32_0 : i32, i32
  }
  func.func @transform_1(%arg0: i32, %arg1: i32, %arg2: i32) -> (i32, i32) {
    %c0_i32 = arith.constant 0 : i32
    %c0_i32_0 = arith.constant 0 : i32
    %c0_i32_1 = arith.constant 0 : i32
    return %c0_i32, %c0_i32_0 : i32, i32
  }
  func.func @transform_2(%arg0: i32, %arg1: i32, %arg2: i32) -> (i32, i32) {
    %c0_i32 = arith.constant 0 : i32
    %c0_i32_0 = arith.constant 0 : i32
    %c0_i32_1 = arith.constant 0 : i32
    return %c0_i32, %c0_i32_0 : i32, i32
  }
  func.func @transform_3(%arg0: i32, %arg1: i32, %arg2: i32) -> (i32, i32) {
    %c0_i32 = arith.constant 0 : i32
    %c0_i32_0 = arith.constant 0 : i32
    %c0_i32_1 = arith.constant 0 : i32
    return %c0_i32, %c0_i32_0 : i32, i32
  }
  func.func @transform_4(%arg0: i32, %arg1: i32, %arg2: i32) -> (i32, i32) {
    %c0_i32 = arith.constant 0 : i32
    %c0_i32_0 = arith.constant 0 : i32
    %c0_i32_1 = arith.constant 0 : i32
    return %c0_i32, %c0_i32_0 : i32, i32
  }
  func.func @transform_5(%arg0: i32, %arg1: i32, %arg2: i32) -> (i32, i32) {
    %c0_i32 = arith.constant 0 : i32
    %c0_i32_0 = arith.constant 0 : i32
    %c0_i32_1 = arith.constant 0 : i32
    return %c0_i32, %c0_i32_0 : i32, i32
  }
  func.func @transform_6(%arg0: i32, %arg1: i32, %arg2: i32) -> (i32, i32) {
    %c0_i32 = arith.constant 0 : i32
    %c0_i32_0 = arith.constant 0 : i32
    %c0_i32_1 = arith.constant 0 : i32
    return %c0_i32, %c0_i32_0 : i32, i32
  }
  func.func @transform_7(%arg0: i32, %arg1: i32, %arg2: i32) -> (i32, i32) {
    %c0_i32 = arith.constant 0 : i32
    %c0_i32_0 = arith.constant 0 : i32
    %c0_i32_1 = arith.constant 0 : i32
    return %c0_i32, %c0_i32_0 : i32, i32
  }
  func.func @transform_8(%arg0: i32, %arg1: i32, %arg2: i32) -> (i32, i32) {
    %c0_i32 = arith.constant 0 : i32
    %c0_i32_0 = arith.constant 0 : i32
    %c0_i32_1 = arith.constant 0 : i32
    return %c0_i32, %c0_i32_0 : i32, i32
  }
}

</mosaic_0001>

<llo_original>
// kernel: tpu_custom_call.1
$region0: #{tpu_custom_call.1}
  #allocation0 [shape = 'u32[]', space=smem, size = 0x4, offset = 0x4, fixed_abs, tag = 'smem constant byte address 0x4 - core index']
  #allocation1 [shape = 'u32[144,128]{1,0:T(1,128)}', space=vmem, size = 0x12000, scoped, tag = 'internal scratch']
  #allocation2 [shape = 'bf16[256,128]{1,0:T(16,128)(2,1)}', space=vmem, size = 0x10000, scoped, tag = 'scratch operand']
  #allocation3 [shape = 'bf16[256,128]{1,0:T(16,128)(2,1)}', space=vmem, size = 0x10000, scoped, tag = 'scratch operand']
  #allocation4 [shape = 'f32[64,128]{1,0:T(8,128)}', space=vmem, size = 0x8000, scoped, tag = 'scratch operand']
  #allocation5 [shape = 'f32[1,128]{1,0:T(1,128)}', space=vmem, size = 0x200, scoped, tag = 'scratch operand']
  #allocation6 [shape = 'f32[1,1]{1,0:T(1,128)S(6)}', space=smem, size = 0x200, scoped, tag = 'scoped memory for tpu_custom_call.1']
  %s0 = inlined_call_operand.hbm [shape: bf16[256,256], index: 0, kind: input, shape index: {}]
  %s1 = inlined_call_operand.hbm [shape: bf16[256,128], index: 1, kind: input, shape index: {}]
  %s2 = inlined_call_operand.hbm [shape: bf16[128,128], index: 2, kind: input, shape index: {}]
  %s3 = inlined_call_operand.vmem [shape: f32[1,128], index: 3, kind: input, shape index: {}]
  %s4 = inlined_call_operand.hbm [shape: bf16[128,128], index: 4, kind: input, shape index: {}]
  %s5 = inlined_call_operand.vmem [shape: f32[1,128], index: 5, kind: input, shape index: {}]
  %s6 = inlined_call_operand.vmem [shape: f32[1,128], index: 6, kind: input, shape index: {}]
  %s7 = inlined_call_operand.<no memory space> [shape: f32[1,1], index: 7, kind: input, shape index: {}]
  %s8 = inlined_call_operand.hbm [shape: f32[1,128], index: 8, kind: output, shape index: {}]
  %s9 = sld [smem:[#allocation0]]
  $region117: #{tpu_custom_call.1} parent=0
    _
  %s11 = ssub.s32 1, %s9
  %s12 = scalar_select 0, %s11, %s9
  %13 = sst [smem:[#allocation6]] %s7
  $region1: #{tpu_custom_call.1} parent=0
    #allocation7 [shape = 'u8[131072]{0}', space=vmem, size = 0x20000, scoped, tag = 'input window, operand 0, single buffered']
    #allocation8 [shape = 's32[2]{0}', space=sflag, size = 0x8, scoped, tag = 'scoped memory for tpu_custom_call.1']
    #allocation9 [shape = 's32[2]{0}', space=sflag, size = 0x8, scoped, tag = 'scoped memory for tpu_custom_call.1']
    #allocation10 [shape = 'u8[65536]{0}', space=vmem, size = 0x10000, scoped, tag = 'input window, operand 1, single buffered']
    #allocation11 [shape = 's32[1]{0}', space=sflag, size = 0x4, scoped, tag = 'scoped memory for tpu_custom_call.1']
    #allocation12 [shape = 'u8[32768]{0}', space=vmem, size = 0x8000, scoped, tag = 'input window, operand 2, single buffered']
    #allocation13 [shape = 'u8[32768]{0}', space=vmem, size = 0x8000, scoped, tag = 'input window, operand 4, single buffered']
    #allocation14 [shape = 's32[1]{0}', space=sflag, size = 0x4, scoped, tag = 'scoped memory for tpu_custom_call.1']
    #allocation15 [shape = 'u8[512]{0}', space=vmem, size = 0x400, scoped, tag = 'output window, operand 0, single buffered']
    %14 = vsyncpa [#allocation8], 0
    %15 = vsyncpa [#allocation11], 0
    %16 = vsyncpa [#allocation14], 0
    %17 = vsyncpa [#allocation9], 0
    loop: start=0, step=1, limit=10
    $region2: #{tpu_custom_call.1} parent=1 // loop_pre_header
      _
    $region3: #{tpu_custom_call.1} parent=1 // loop_header
      %s19 = sphi 0, %s23
      %p20 = scmp.ge.s32.totalorder %s19, 10
      %s26 = sphi 0, %s45
      %s27 = sphi 0, %s41
      %s28 = sphi 0, %s37
      %s29 = sphi 0, %s26
      %s30 = sphi 0, %s27
      %s31 = sphi 0, %s28
      %s32 = sphi 0, %s29
      %s33 = sphi 0, %s30
      %s34 = sphi 0, %s31
      %s46 = sphi 0, %s46
      %s48 = sphi 0, %s46
      %s49 = sphi 0, %s48
      %s63 = sphi 0, %s49
      %s67 = sphi 0, %s67
      %s69 = sphi 0, %s67
      %s70 = sphi 0, %s69
      %s84 = sphi 0, %s70
      %s88 = sphi 0, %s88
      %s90 = sphi 0, %s88
      %s91 = sphi 0, %s90
      %s105 = sphi 0, %s91
      %s109 = sphi 0, %s109
      %s111 = sphi 0, %s109
      %s112 = sphi 0, %s111
      %s126 = sphi 0, %s112
      %s130 = sphi 0, %s130
      %s132 = sphi 0, %s130
      %s133 = sphi 0, %s132
      %s147 = sphi 0, %s133
      %s151 = sphi 0, %s151
      %s153 = sphi 0, %s151
      %s154 = sphi 0, %s153
      %s168 = sphi 0, %s154
      %s172 = sphi 0, %s172
      %s174 = sphi 0, %s172
      %s175 = sphi 0, %s174
      %s189 = sphi 0, %s175
      %s193 = sphi 0, %s193
      %s195 = sphi 0, %s193
      %s196 = sphi 0, %s195
      %s210 = sphi 0, %s196
      %s214 = sphi 0, %s214
      %s216 = sphi 0, %s214
      %s217 = sphi 0, %s216
      %s231 = sphi 0, %s217
    $region4: #{tpu_custom_call.1} parent=1 // loop_header_branch
      %22 = sbr.rel (%p20) target = $region8
    $region5: #{tpu_custom_call.1} parent=1 // loop_body
      %s24 = ssub.s32 %s19, 1
      %s25 = ssub.s32 %s19, 2
      %s35 = sadd.s32 1, %s28
      %p36 = scmp.ge.s32.totalorder %s35, 1
      %s37 = scalar_select %p36, 0, %s35
      %s38 = sadd.s32 1, %s27
      %s39 = scalar_select %p36, %s38, %s27
      %p40 = scmp.ge.s32.totalorder %s39, 4
      %s41 = scalar_select %p40, 0, %s39
      %s42 = sadd.s32 1, %s26
      %s43 = scalar_select %p40, %s42, %s26
      %p44 = scmp.ge.s32.totalorder %s43, 2
      %s45 = scalar_select %p44, 0, %s43
      %s47 = sadd.s32 %s46, 1
      %p50 = scmp.eq.s32.totalorder %s19, 7
      %p51 = scmp.ne.s32.totalorder %s46, %s48
      %p52 = scmp.eq.s32.totalorder %s19, 0
      %p53 = por %p51, %p52
      %p54 = scmp.ne.s32.totalorder %s46, %s48
      %p55 = scmp.eq.s32.totalorder %s24, 7
      %p56 = por %p54, %p55
      %p57 = scmp.ne.s32.totalorder %s48, %s49
      %p58 = scmp.eq.s32.totalorder %s24, 0
      %p59 = por %p57, %p58
      %p60 = scmp.ne.s32.totalorder %s48, %s49
      %p61 = scmp.eq.s32.totalorder %s25, 7
      %p62 = por %p60, %p61
      %p64 = scmp.ne.s32.totalorder %s49, %s63
      %p65 = scmp.eq.s32.totalorder %s25, 0
      %p66 = por %p64, %p65
      %s68 = sadd.s32 %s67, 1
      %p71 = scmp.eq.s32.totalorder %s19, 7
      %p72 = scmp.ne.s32.totalorder %s67, %s69
      %p73 = scmp.eq.s32.totalorder %s19, 0
      %p74 = por %p72, %p73
      %p75 = scmp.ne.s32.totalorder %s67, %s69
      %p76 = scmp.eq.s32.totalorder %s24, 7
      %p77 = por %p75, %p76
      %p78 = scmp.ne.s32.totalorder %s69, %s70
      %p79 = scmp.eq.s32.totalorder %s24, 0
      %p80 = por %p78, %p79
      %p81 = scmp.ne.s32.totalorder %s69, %s70
      %p82 = scmp.eq.s32.totalorder %s25, 7
      %p83 = por %p81, %p82
      %p85 = scmp.ne.s32.totalorder %s70, %s84
      %p86 = scmp.eq.s32.totalorder %s25, 0
      %p87 = por %p85, %p86
      %s89 = sadd.s32 %s88, 1
      %p92 = scmp.eq.s32.totalorder %s19, 7
      %p93 = scmp.ne.s32.totalorder %s88, %s90
      %p94 = scmp.eq.s32.totalorder %s19, 0
      %p95 = por %p93, %p94
      %p96 = scmp.ne.s32.totalorder %s88, %s90
      %p97 = scmp.eq.s32.totalorder %s24, 7
      %p98 = por %p96, %p97
      %p99 = scmp.ne.s32.totalorder %s90, %s91
      %p100 = scmp.eq.s32.totalorder %s24, 0
      %p101 = por %p99, %p100
      %p102 = scmp.ne.s32.totalorder %s90, %s91
      %p103 = scmp.eq.s32.totalorder %s25, 7
      %p104 = por %p102, %p103
      %p106 = scmp.ne.s32.totalorder %s91, %s105
      %p107 = scmp.eq.s32.totalorder %s25, 0
      %p108 = por %p106, %p107
      %s110 = sadd.s32 %s109, 1
      %p113 = scmp.eq.s32.totalorder %s19, 7
      %p114 = scmp.ne.s32.totalorder %s109, %s111
      %p115 = scmp.eq.s32.totalorder %s19, 0
      %p116 = por %p114, %p115
      %p117 = scmp.ne.s32.totalorder %s109, %s111
      %p118 = scmp.eq.s32.totalorder %s24, 7
      %p119 = por %p117, %p118
      %p120 = scmp.ne.s32.totalorder %s111, %s112
      %p121 = scmp.eq.s32.totalorder %s24, 0
      %p122 = por %p120, %p121
      %p123 = scmp.ne.s32.totalorder %s111, %s112
      %p124 = scmp.eq.s32.totalorder %s25, 7
      %p125 = por %p123, %p124
      %p127 = scmp.ne.s32.totalorder %s112, %s126
      %p128 = scmp.eq.s32.totalorder %s25, 0
      %p129 = por %p127, %p128
      %s131 = sadd.s32 %s130, 1
      %p134 = scmp.eq.s32.totalorder %s19, 7
      %p135 = scmp.ne.s32.totalorder %s130, %s132
      %p136 = scmp.eq.s32.totalorder %s19, 0
      %p137 = por %p135, %p136
      %p138 = scmp.ne.s32.totalorder %s130, %s132
      %p139 = scmp.eq.s32.totalorder %s24, 7
      %p140 = por %p138, %p139
      %p141 = scmp.ne.s32.totalorder %s132, %s133
      %p142 = scmp.eq.s32.totalorder %s24, 0
      %p143 = por %p141, %p142
      %p144 = scmp.ne.s32.totalorder %s132, %s133
      %p145 = scmp.eq.s32.totalorder %s25, 7
      %p146 = por %p144, %p145
      %p148 = scmp.ne.s32.totalorder %s133, %s147
      %p149 = scmp.eq.s32.totalorder %s25, 0
      %p150 = por %p148, %p149
      %s152 = sadd.s32 %s151, 1
      %p155 = scmp.eq.s32.totalorder %s19, 7
      %p156 = scmp.ne.s32.totalorder %s151, %s153
      %p157 = scmp.eq.s32.totalorder %s19, 0
      %p158 = por %p156, %p157
      %p159 = scmp.ne.s32.totalorder %s151, %s153
      %p160 = scmp.eq.s32.totalorder %s24, 7
      %p161 = por %p159, %p160
      %p162 = scmp.ne.s32.totalorder %s153, %s154
      %p163 = scmp.eq.s32.totalorder %s24, 0
      %p164 = por %p162, %p163
      %p165 = scmp.ne.s32.totalorder %s153, %s154
      %p166 = scmp.eq.s32.totalorder %s25, 7
      %p167 = por %p165, %p166
      %p169 = scmp.ne.s32.totalorder %s154, %s168
      %p170 = scmp.eq.s32.totalorder %s25, 0
      %p171 = por %p169, %p170
      %s173 = sadd.s32 %s172, 1
      %p176 = scmp.eq.s32.totalorder %s19, 7
      %p177 = scmp.ne.s32.totalorder %s172, %s174
      %p178 = scmp.eq.s32.totalorder %s19, 0
      %p179 = por %p177, %p178
      %p180 = scmp.ne.s32.totalorder %s172, %s174
      %p181 = scmp.eq.s32.totalorder %s24, 7
      %p182 = por %p180, %p181
      %p183 = scmp.ne.s32.totalorder %s174, %s175
      %p184 = scmp.eq.s32.totalorder %s24, 0
      %p185 = por %p183, %p184
      %p186 = scmp.ne.s32.totalorder %s174, %s175
      %p187 = scmp.eq.s32.totalorder %s25, 7
      %p188 = por %p186, %p187
      %p190 = scmp.ne.s32.totalorder %s175, %s189
      %p191 = scmp.eq.s32.totalorder %s25, 0
      %p192 = por %p190, %p191
      %s194 = sadd.s32 %s193, 1
      %p197 = scmp.eq.s32.totalorder %s19, 7
      %p198 = scmp.ne.s32.totalorder %s193, %s195
      %p199 = scmp.eq.s32.totalorder %s19, 0
      %p200 = por %p198, %p199
      %p201 = scmp.ne.s32.totalorder %s193, %s195
      %p202 = scmp.eq.s32.totalorder %s24, 7
      %p203 = por %p201, %p202
      %p204 = scmp.ne.s32.totalorder %s195, %s196
      %p205 = scmp.eq.s32.totalorder %s24, 0
      %p206 = por %p204, %p205
      %p207 = scmp.ne.s32.totalorder %s195, %s196
      %p208 = scmp.eq.s32.totalorder %s25, 7
      %p209 = por %p207, %p208
      %p211 = scmp.ne.s32.totalorder %s196, %s210
      %p212 = scmp.eq.s32.totalorder %s25, 0
      %p213 = por %p211, %p212
      %s215 = sadd.s32 %s214, 1
      %p218 = scmp.eq.s32.totalorder %s19, 7
      %p219 = scmp.ne.s32.totalorder %s214, %s216
      %p220 = scmp.eq.s32.totalorder %s19, 0
      %p221 = por %p219, %p220
      %p222 = scmp.ne.s32.totalorder %s214, %s216
      %p223 = scmp.eq.s32.totalorder %s24, 7
      %p224 = por %p222, %p223
      %p225 = scmp.ne.s32.totalorder %s216, %s217
      %p226 = scmp.eq.s32.totalorder %s24, 0
      %p227 = por %p225, %p226
      %p228 = scmp.ne.s32.totalorder %s216, %s217
      %p229 = scmp.eq.s32.totalorder %s25, 7
      %p230 = por %p228, %p229
      %p232 = scmp.ne.s32.totalorder %s217, %s231
      %p233 = scmp.eq.s32.totalorder %s25, 0
      %p234 = por %p232, %p233
      %p235 = scmp.le.s32.totalorder 1, %s19
      %p236 = scmp.lt.s32.totalorder %s19, 9
      %p237 = pnand %p235, %p236
      %p238 = pneg %p237
      // Predicated region
      $region9: #{tpu_custom_call.1} parent=5 // pred_check
        _
      $region10: #{tpu_custom_call.1} parent=5 // pred_check_branch
        %240 = sbr.rel (%p237) target = $region12
      $region11: #{tpu_custom_call.1} parent=5 // pred_region
        %s241 = ssub.s32 %s19, 1
        // Predicated region
        $region13: #{tpu_custom_call.1} parent=11 // pred_check
          %p242 = pneg %p59
        $region14: #{tpu_custom_call.1} parent=11 // pred_check_branch
          %244 = sbr.rel (%p242) target = $region16
        $region15: #{tpu_custom_call.1} parent=11 // pred_region
          %s246 = ssub.s32 4096, 4096
          %247 = vsyncadd [#allocation8], %s246
          %s248 = sshll.u32 [#allocation7], 4
          %s249 = int_to_ptr.vmem [resolvable:$true] %s248
          %254 = dma.hbm_to_vmem [thread:$0]  %s0, 4096, %s249, [#allocation8], 128, 128, 8
        $region16: #{tpu_custom_call.1} parent=11 // pred_fallthru
          _
        // Predicated region
        $region17: #{tpu_custom_call.1} parent=11 // pred_check
          %p255 = pneg %p80
        $region18: #{tpu_custom_call.1} parent=11 // pred_check_branch
          %257 = sbr.rel (%p255) target = $region20
        $region19: #{tpu_custom_call.1} parent=11 // pred_region
          %s259 = ssub.s32 2048, 2048
          %260 = vsyncadd [#allocation11], %s259
          %s261 = sshll.u32 [#allocation10], 4
          %s262 = int_to_ptr.vmem [resolvable:$true] %s261
          %267 = dma.hbm_to_vmem [thread:$0]  %s1, 2048, %s262, [#allocation11], 64, 64, 4
        $region20: #{tpu_custom_call.1} parent=11 // pred_fallthru
          _
        // Predicated region
        $region21: #{tpu_custom_call.1} parent=11 // pred_check
          %p268 = pneg %p101
        $region22: #{tpu_custom_call.1} parent=11 // pred_check_branch
          %270 = sbr.rel (%p268) target = $region24
        $region23: #{tpu_custom_call.1} parent=11 // pred_region
          %s272 = ssub.s32 1024, 1024
          %273 = vsyncadd [#allocation11], %s272
          %s274 = sshll.u32 [#allocation12], 4
          %s275 = int_to_ptr.vmem [resolvable:$true] %s274
          %280 = dma.hbm_to_vmem [thread:$0]  %s2, 1024, %s275, [#allocation11], 64, 64, 4
        $region24: #{tpu_custom_call.1} parent=11 // pred_fallthru
          _
        // Predicated region
        $region25: #{tpu_custom_call.1} parent=11 // pred_check
          %p281 = pneg %p122
        $region26: #{tpu_custom_call.1} parent=11 // pred_check_branch
          %283 = sbr.rel (%p281) target = $region28
        $region27: #{tpu_custom_call.1} parent=11 // pred_region
          _
        $region28: #{tpu_custom_call.1} parent=11 // pred_fallthru
          _
        // Predicated region
        $region29: #{tpu_custom_call.1} parent=11 // pred_check
          %p284 = pneg %p143
        $region30: #{tpu_custom_call.1} parent=11 // pred_check_branch
          %286 = sbr.rel (%p284) target = $region32
        $region31: #{tpu_custom_call.1} parent=11 // pred_region
          %s288 = ssub.s32 1024, 1024
          %289 = vsyncadd [#allocation14], %s288
          %s290 = sshll.u32 [#allocation13], 4
          %s291 = int_to_ptr.vmem [resolvable:$true] %s290
          %296 = dma.hbm_to_vmem [thread:$0]  %s4, 1024, %s291, [#allocation14], 64, 64, 4
        $region32: #{tpu_custom_call.1} parent=11 // pred_fallthru
          _
        // Predicated region
        $region33: #{tpu_custom_call.1} parent=11 // pred_check
          %p297 = pneg %p164
        $region34: #{tpu_custom_call.1} parent=11 // pred_check_branch
          %299 = sbr.rel (%p297) target = $region36
        $region35: #{tpu_custom_call.1} parent=11 // pred_region
          _
        $region36: #{tpu_custom_call.1} parent=11 // pred_fallthru
          _
        // Predicated region
        $region37: #{tpu_custom_call.1} parent=11 // pred_check
          %p300 = pneg %p185
        $region38: #{tpu_custom_call.1} parent=11 // pred_check_branch
          %302 = sbr.rel (%p300) target = $region40
        $region39: #{tpu_custom_call.1} parent=11 // pred_region
          _
        $region40: #{tpu_custom_call.1} parent=11 // pred_fallthru
          _
        // Predicated region
        $region41: #{tpu_custom_call.1} parent=11 // pred_check
          %p303 = pneg %p206
        $region42: #{tpu_custom_call.1} parent=11 // pred_check_branch
          %305 = sbr.rel (%p303) target = $region44
        $region43: #{tpu_custom_call.1} parent=11 // pred_region
          _
        $region44: #{tpu_custom_call.1} parent=11 // pred_fallthru
          _
      $region12: #{tpu_custom_call.1} parent=5 // pred_fallthru
        _
      %p306 = scmp.lt.s32.totalorder %s19, 8
      // Predicated region
      $region45: #{tpu_custom_call.1} parent=5 // pred_check
        %p307 = pneg %p306
      $region46: #{tpu_custom_call.1} parent=5 // pred_check_branch
        %309 = sbr.rel (%p307) target = $region48
      $region47: #{tpu_custom_call.1} parent=5 // pred_region
        _
      $region48: #{tpu_custom_call.1} parent=5 // pred_fallthru
        _
      %p310 = scmp.le.s32.totalorder 1, %s19
      %p311 = scmp.lt.s32.totalorder %s19, 9
      %p312 = pnand %p310, %p311
      %p313 = pneg %p312
      // Predicated region
      $region49: #{tpu_custom_call.1} parent=5 // pred_check
        _
      $region50: #{tpu_custom_call.1} parent=5 // pred_check_branch
        %315 = sbr.rel (%p312) target = $region52
      $region51: #{tpu_custom_call.1} parent=5 // pred_region
        %s316 = ssub.s32 %s19, 1
        // Predicated region
        $region53: #{tpu_custom_call.1} parent=51 // pred_check
          %p317 = pneg %p59
        $region54: #{tpu_custom_call.1} parent=51 // pred_check_branch
          %319 = sbr.rel (%p317) target = $region56
        $region55: #{tpu_custom_call.1} parent=51 // pred_region
          %320 = dma.done [#allocation8], 4096
        $region56: #{tpu_custom_call.1} parent=51 // pred_fallthru
          _
        // Predicated region
        $region57: #{tpu_custom_call.1} parent=51 // pred_check
          %p321 = pneg %p80
        $region58: #{tpu_custom_call.1} parent=51 // pred_check_branch
          %323 = sbr.rel (%p321) target = $region60
        $region59: #{tpu_custom_call.1} parent=51 // pred_region
          %324 = dma.done [#allocation11], 2048
        $region60: #{tpu_custom_call.1} parent=51 // pred_fallthru
          _
        // Predicated region
        $region61: #{tpu_custom_call.1} parent=51 // pred_check
          %p325 = pneg %p101
        $region62: #{tpu_custom_call.1} parent=51 // pred_check_branch
          %327 = sbr.rel (%p325) target = $region64
        $region63: #{tpu_custom_call.1} parent=51 // pred_region
          %328 = dma.done [#allocation11], 1024
        $region64: #{tpu_custom_call.1} parent=51 // pred_fallthru
          _
        // Predicated region
        $region65: #{tpu_custom_call.1} parent=51 // pred_check
          %p329 = pneg %p143
        $region66: #{tpu_custom_call.1} parent=51 // pred_check_branch
          %331 = sbr.rel (%p329) target = $region68
        $region67: #{tpu_custom_call.1} parent=51 // pred_region
          %332 = dma.done [#allocation14], 1024
        $region68: #{tpu_custom_call.1} parent=51 // pred_fallthru
          _
        %p333 = pneg %p59
        %p334 = pneg %p56
        %p335 = pneg %p80
        %p336 = pneg %p77
        %p337 = pneg %p101
        %p338 = pneg %p98
        %p339 = pneg %p122
        %p340 = pneg %p119
        %p341 = pneg %p143
        %p342 = pneg %p140
        %p343 = pneg %p164
        %p344 = pneg %p161
        %p345 = pneg %p185
        %p346 = pneg %p182
        %p347 = pneg %p206
        %p348 = pneg %p203
        %p349 = pneg %p227
        %p350 = pneg %p224
        %s352 = smul.u32 %s30, 64
        %s353 = smul.u32 %s31, 256
        %p354 = scmp.eq.s32.totalorder %s29, 0
        %p355 = scmp.eq.s32.totalorder %s30, 0
        %p356 = pnand %p354, %p355
        %p357 = pneg %p356
        %p358 = scmp.eq.s32.totalorder %s31, 0
        %p359 = pnand %p357, %p358
        %p360 = pneg %p359
        // Predicated region
        $region69: #{tpu_custom_call.1} parent=51 // pred_check
          _
        $region70: #{tpu_custom_call.1} parent=51 // pred_check_branch
          %362 = sbr.rel (%p359) target = $region72
        $region71: #{tpu_custom_call.1} parent=51 // pred_region
          %363 = vst [vmem:[#allocation5] sm:$0x1] 0.0
        $region72: #{tpu_custom_call.1} parent=51 // pred_fallthru
          _
        // Predicated region
        $region73: #{tpu_custom_call.1} parent=51 // pred_check
          %p364 = pneg %p355
        $region74: #{tpu_custom_call.1} parent=51 // pred_check_branch
          %366 = sbr.rel (%p364) target = $region76
        $region75: #{tpu_custom_call.1} parent=51 // pred_region
          // Predicated region
          $region77: #{tpu_custom_call.1} parent=75 // pred_check
            %p367 = pneg %p354
          $region78: #{tpu_custom_call.1} parent=75 // pred_check_branch
            %369 = sbr.rel (%p367) target = $region80
          $region79: #{tpu_custom_call.1} parent=75 // pred_region
            %s370 = sshra.s32 %s353, 3
            %s371 = sand.u32 %s353, 7
            %s372 = smul.addr %s370, 4
            %s373 = scalar_lea.vmem [#allocation10], %s372
            %v374 = vld [vmem:[%s373] sm:$0xf]
            %v375 = vld [vmem:[%s373 + $0x4] sm:$0xf]
            %v376 = vld [vmem:[%s373 + $0x8] sm:$0xf]
            %v377 = vld [vmem:[%s373 + $0xc] sm:$0xf]
            %v378 = vld [vmem:[%s373 + $0x10] sm:$0xf]
            %v379 = vld [vmem:[%s373 + $0x14] sm:$0xf]
            %v380 = vld [vmem:[%s373 + $0x18] sm:$0xf]
            %v381 = vld [vmem:[%s373 + $0x1c] sm:$0xf]
            %v382 = vld [vmem:[%s373 + $0x20] sm:$0xf]
            %v383 = vld [vmem:[%s373 + $0x24] sm:$0xf]
            %v384 = vld [vmem:[%s373 + $0x28] sm:$0xf]
            %v385 = vld [vmem:[%s373 + $0x2c] sm:$0xf]
            %v386 = vld [vmem:[%s373 + $0x30] sm:$0xf]
            %v387 = vld [vmem:[%s373 + $0x34] sm:$0xf]
            %v388 = vld [vmem:[%s373 + $0x38] sm:$0xf]
            %v389 = vld [vmem:[%s373 + $0x3c] sm:$0xf]
            %v390 = vld [vmem:[%s373 + $0x40] sm:$0xf]
            %v391 = vld [vmem:[%s373 + $0x44] sm:$0xf]
            %v392 = vld [vmem:[%s373 + $0x48] sm:$0xf]
            %v393 = vld [vmem:[%s373 + $0x4c] sm:$0xf]
            %v394 = vld [vmem:[%s373 + $0x50] sm:$0xf]
            %v395 = vld [vmem:[%s373 + $0x54] sm:$0xf]
            %v396 = vld [vmem:[%s373 + $0x58] sm:$0xf]
            %v397 = vld [vmem:[%s373 + $0x5c] sm:$0xf]
            %v398 = vld [vmem:[%s373 + $0x60] sm:$0xf]
            %v399 = vld [vmem:[%s373 + $0x64] sm:$0xf]
            %v400 = vld [vmem:[%s373 + $0x68] sm:$0xf]
            %v401 = vld [vmem:[%s373 + $0x6c] sm:$0xf]
            %v402 = vld [vmem:[%s373 + $0x70] sm:$0xf]
            %v403 = vld [vmem:[%s373 + $0x74] sm:$0xf]
            %v404 = vld [vmem:[%s373 + $0x78] sm:$0xf]
            %v405 = vld [vmem:[%s373 + $0x7c] sm:$0xf]
            %v406 = vld [vmem:[#allocation12] sm:$0xf]
            %v407 = vld [vmem:[#allocation12 + $0x4] sm:$0xf]
            %v408 = vld [vmem:[#allocation12 + $0x8] sm:$0xf]
            %v409 = vld [vmem:[#allocation12 + $0xc] sm:$0xf]
            %v410 = vld [vmem:[#allocation12 + $0x10] sm:$0xf]
            %v411 = vld [vmem:[#allocation12 + $0x14] sm:$0xf]
            %v412 = vld [vmem:[#allocation12 + $0x18] sm:$0xf]
            %v413 = vld [vmem:[#allocation12 + $0x1c] sm:$0xf]
            %v414 = vld [vmem:[#allocation12 + $0x20] sm:$0xf]
            %v415 = vld [vmem:[#allocation12 + $0x24] sm:$0xf]
            %v416 = vld [vmem:[#allocation12 + $0x28] sm:$0xf]
            %v417 = vld [vmem:[#allocation12 + $0x2c] sm:$0xf]
            %v418 = vld [vmem:[#allocation12 + $0x30] sm:$0xf]
            %v419 = vld [vmem:[#allocation12 + $0x34] sm:$0xf]
            %v420 = vld [vmem:[#allocation12 + $0x38] sm:$0xf]
            %v421 = vld [vmem:[#allocation12 + $0x3c] sm:$0xf]
            %v454 = vunpack.c.l.b16 %v374
            %v455 = vunpack.c.l.b16 %v375
            %v456 = vunpack.c.l.b16 %v376
            %v457 = vunpack.c.l.b16 %v377
            %v458 = vunpack.c.l.b16 %v378
            %v459 = vunpack.c.l.b16 %v379
            %v460 = vunpack.c.l.b16 %v380
            %v461 = vunpack.c.l.b16 %v381
            %v462 = vunpack.c.l.b16 %v382
            %v463 = vunpack.c.l.b16 %v383
            %v464 = vunpack.c.l.b16 %v384
            %v465 = vunpack.c.l.b16 %v385
            %v466 = vunpack.c.l.b16 %v386
            %v467 = vunpack.c.l.b16 %v387
            %v468 = vunpack.c.l.b16 %v388
            %v469 = vunpack.c.l.b16 %v389
            %v470 = vunpack.c.l.b16 %v390
            %v471 = vunpack.c.l.b16 %v391
            %v472 = vunpack.c.l.b16 %v392
            %v473 = vunpack.c.l.b16 %v393
            %v474 = vunpack.c.l.b16 %v394
            %v475 = vunpack.c.l.b16 %v395
            %v476 = vunpack.c.l.b16 %v396
            %v477 = vunpack.c.l.b16 %v397
            %v478 = vunpack.c.l.b16 %v398
            %v479 = vunpack.c.l.b16 %v399
            %v480 = vunpack.c.l.b16 %v400
            %v481 = vunpack.c.l.b16 %v401
            %v482 = vunpack.c.l.b16 %v402
            %v483 = vunpack.c.l.b16 %v403
            %v484 = vunpack.c.l.b16 %v404
            %v485 = vunpack.c.l.b16 %v405
            %v486 = vpack.c.b16 %v455, %v454
            %v487 = vpack.c.b16 %v457, %v456
            %v488 = vpack.c.b16 %v459, %v458
            %v489 = vpack.c.b16 %v461, %v460
            %v490 = vpack.c.b16 %v463, %v462
            %v491 = vpack.c.b16 %v465, %v464
            %v492 = vpack.c.b16 %v467, %v466
            %v493 = vpack.c.b16 %v469, %v468
            %v494 = vpack.c.b16 %v471, %v470
            %v495 = vpack.c.b16 %v473, %v472
            %v496 = vpack.c.b16 %v475, %v474
            %v497 = vpack.c.b16 %v477, %v476
            %v498 = vpack.c.b16 %v479, %v478
            %v499 = vpack.c.b16 %v481, %v480
            %v500 = vpack.c.b16 %v483, %v482
            %v501 = vpack.c.b16 %v485, %v484
            %v534 = vunpack.c.l.b16 %v406
            %v535 = vunpack.c.l.b16 %v407
            %v536 = vunpack.c.l.b16 %v408
            %v537 = vunpack.c.l.b16 %v409
            %v538 = vunpack.c.l.b16 %v410
            %v539 = vunpack.c.l.b16 %v411
            %v540 = vunpack.c.l.b16 %v412
            %v541 = vunpack.c.l.b16 %v413
            %v542 = vunpack.c.l.b16 %v414
            %v543 = vunpack.c.l.b16 %v415
            %v544 = vunpack.c.l.b16 %v416
            %v545 = vunpack.c.l.b16 %v417
            %v546 = vunpack.c.l.b16 %v418
            %v547 = vunpack.c.l.b16 %v419
            %v548 = vunpack.c.l.b16 %v420
            %v549 = vunpack.c.l.b16 %v421
            %v550 = vpack.c.b16 %v535, %v534
            %v551 = vpack.c.b16 %v537, %v536
            %v552 = vpack.c.b16 %v539, %v538
            %v553 = vpack.c.b16 %v541, %v540
            %v554 = vpack.c.b16 %v543, %v542
            %v555 = vpack.c.b16 %v545, %v544
            %v556 = vpack.c.b16 %v547, %v546
            %v557 = vpack.c.b16 %v549, %v548
            %566 = vmatprep.subr.bf16.mxu0 0
            %567 = vmatpush1.bf16.msra.mxu0 %v550
            %568 = vmatprep.subr.bf16.mxu0 0
            %569 = vmatpush1.bf16.msra.mxu0 %v551
            %570 = vmatprep.subr.bf16.mxu0 0
            %571 = vmatpush1.bf16.msra.mxu0 %v552
            %572 = vmatprep.subr.bf16.mxu0 0
            %573 = vmatpush1.bf16.msra.mxu0 %v553
            %574 = vmatprep.subr.bf16.mxu0 0
            %575 = vmatpush1.bf16.msra.mxu0 %v554
            %576 = vmatprep.subr.bf16.mxu0 0
            %577 = vmatpush1.bf16.msra.mxu0 %v555
            %578 = vmatprep.subr.bf16.mxu0 0
            %579 = vmatpush1.bf16.msra.mxu0 %v556
            %580 = vmatprep.subr.bf16.mxu0 0
            %581 = vmatpush1.bf16.msra.mxu0 %v557
            %582 = vmatprep.subr.bf16.mxu0 0
            %583 = vmatpush1.bf16.msra.mxu0 0
            %584 = vmatprep.subr.bf16.mxu0 0
            %585 = vmatpush1.bf16.msra.mxu0 0
            %586 = vmatprep.subr.bf16.mxu0 0
            %587 = vmatpush1.bf16.msra.mxu0 0
            %588 = vmatprep.subr.bf16.mxu0 0
            %589 = vmatpush1.bf16.msra.mxu0 0
            %590 = vmatprep.subr.bf16.mxu0 0
            %591 = vmatpush1.bf16.msra.mxu0 0
            %592 = vmatprep.subr.bf16.mxu0 0
            %593 = vmatpush1.bf16.msra.mxu0 0
            %594 = vmatprep.subr.bf16.mxu0 0
            %595 = vmatpush1.bf16.msra.mxu0 0
            %596 = vmatprep.subr.bf16.mxu0 0
            %597 = vmatpush1.bf16.msra.mxu0 0
            %598 = vmatprep.mubr.bf16.mxu0 0
            %599 = vmatmul.mubr.bf16.gmra.mrb[0].mxu0 %v486
            %v600 = vpop.f32.mrb[0].mxu0
            %v601 = vadd.f32 0.0, %v600
            %v602 = vpop.f32.mrb[0].mxu0
            %v603 = vpop.f32.mrb[0].mxu0
            %v604 = vadd.f32 0.0, %v603
            %v605 = vpop.f32.mrb[0].mxu0
            %606 = vmatprep.mubr.bf16.mxu0 0
            %607 = vmatmul.mubr.bf16.gmra.mrb[0].mxu0 %v487
            %v608 = vpop.f32.mrb[0].mxu0
            %v609 = vadd.f32 0.0, %v608
            %v610 = vpop.f32.mrb[0].mxu0
            %v611 = vpop.f32.mrb[0].mxu0
            %v612 = vadd.f32 0.0, %v611
            %v613 = vpop.f32.mrb[0].mxu0
            %614 = vmatprep.mubr.bf16.mxu0 0
            %615 = vmatmul.mubr.bf16.gmra.mrb[0].mxu0 %v488
            %v616 = vpop.f32.mrb[0].mxu0
            %v617 = vadd.f32 0.0, %v616
            %v618 = vpop.f32.mrb[0].mxu0
            %v619 = vpop.f32.mrb[0].mxu0
            %v620 = vadd.f32 0.0, %v619
            %v621 = vpop.f32.mrb[0].mxu0
            %622 = vmatprep.mubr.bf16.mxu0 0
            %623 = vmatmul.mubr.bf16.gmra.mrb[0].mxu0 %v489
            %v624 = vpop.f32.mrb[0].mxu0
            %v625 = vadd.f32 0.0, %v624
            %v626 = vpop.f32.mrb[0].mxu0
            %v627 = vpop.f32.mrb[0].mxu0
            %v628 = vadd.f32 0.0, %v627
            %v629 = vpop.f32.mrb[0].mxu0
            %630 = vmatprep.mubr.bf16.mxu0 0
            %631 = vmatmul.mubr.bf16.gmra.mrb[0].mxu0 %v490
            %v632 = vpop.f32.mrb[0].mxu0
            %v633 = vadd.f32 0.0, %v632
            %v634 = vpop.f32.mrb[0].mxu0
            %v635 = vpop.f32.mrb[0].mxu0
            %v636 = vadd.f32 0.0, %v635
            %v637 = vpop.f32.mrb[0].mxu0
            %638 = vmatprep.mubr.bf16.mxu0 0
            %639 = vmatmul.mubr.bf16.gmra.mrb[0].mxu0 %v491
            %v640 = vpop.f32.mrb[0].mxu0
            %v641 = vadd.f32 0.0, %v640
            %v642 = vpop.f32.mrb[0].mxu0
            %v643 = vpop.f32.mrb[0].mxu0
            %v644 = vadd.f32 0.0, %v643
            %v645 = vpop.f32.mrb[0].mxu0
            %646 = vmatprep.mubr.bf16.mxu0 0
            %647 = vmatmul.mubr.bf16.gmra.mrb[0].mxu0 %v492
            %v648 = vpop.f32.mrb[0].mxu0
            %v649 = vadd.f32 0.0, %v648
            %v650 = vpop.f32.mrb[0].mxu0
            %v651 = vpop.f32.mrb[0].mxu0
            %v652 = vadd.f32 0.0, %v651
            %v653 = vpop.f32.mrb[0].mxu0
            %654 = vmatprep.mubr.bf16.mxu0 0
            %655 = vmatmul.mubr.bf16.gmra.mrb[0].mxu0 %v493
            %v656 = vpop.f32.mrb[0].mxu0
            %v657 = vadd.f32 0.0, %v656
            %v658 = vpop.f32.mrb[0].mxu0
            %v659 = vpop.f32.mrb[0].mxu0
            %v660 = vadd.f32 0.0, %v659
            %v661 = vpop.f32.mrb[0].mxu0
            %662 = vmatprep.mubr.bf16.mxu0 0
            %663 = vmatmul.mubr.bf16.gmra.mrb[0].mxu0 %v494
            %v664 = vpop.f32.mrb[0].mxu0
            %v665 = vadd.f32 0.0, %v664
            %v666 = vpop.f32.mrb[0].mxu0
            %v667 = vpop.f32.mrb[0].mxu0
            %v668 = vadd.f32 0.0, %v667
            %v669 = vpop.f32.mrb[0].mxu0
            %670 = vmatprep.mubr.bf16.mxu0 0
            %671 = vmatmul.mubr.bf16.gmra.mrb[0].mxu0 %v495
            %v672 = vpop.f32.mrb[0].mxu0
            %v673 = vadd.f32 0.0, %v672
            %v674 = vpop.f32.mrb[0].mxu0
            %v675 = vpop.f32.mrb[0].mxu0
            %v676 = vadd.f32 0.0, %v675
            %v677 = vpop.f32.mrb[0].mxu0
            %678 = vmatprep.mubr.bf16.mxu0 0
            %679 = vmatmul.mubr.bf16.gmra.mrb[0].mxu0 %v496
            %v680 = vpop.f32.mrb[0].mxu0
            %v681 = vadd.f32 0.0, %v680
            %v682 = vpop.f32.mrb[0].mxu0
            %v683 = vpop.f32.mrb[0].mxu0
            %v684 = vadd.f32 0.0, %v683
            %v685 = vpop.f32.mrb[0].mxu0
            %686 = vmatprep.mubr.bf16.mxu0 0
            %687 = vmatmul.mubr.bf16.gmra.mrb[0].mxu0 %v497
            %v688 = vpop.f32.mrb[0].mxu0
            %v689 = vadd.f32 0.0, %v688
            %v690 = vpop.f32.mrb[0].mxu0
            %v691 = vpop.f32.mrb[0].mxu0
            %v692 = vadd.f32 0.0, %v691
            %v693 = vpop.f32.mrb[0].mxu0
            %694 = vmatprep.mubr.bf16.mxu0 0
            %695 = vmatmul.mubr.bf16.gmra.mrb[0].mxu0 %v498
            %v696 = vpop.f32.mrb[0].mxu0
            %v697 = vadd.f32 0.0, %v696
            %v698 = vpop.f32.mrb[0].mxu0
            %v699 = vpop.f32.mrb[0].mxu0
            %v700 = vadd.f32 0.0, %v699
            %v701 = vpop.f32.mrb[0].mxu0
            %702 = vmatprep.mubr.bf16.mxu0 0
            %703 = vmatmul.mubr.bf16.gmra.mrb[0].mxu0 %v499
            %v704 = vpop.f32.mrb[0].mxu0
            %v705 = vadd.f32 0.0, %v704
            %v706 = vpop.f32.mrb[0].mxu0
            %v707 = vpop.f32.mrb[0].mxu0
            %v708 = vadd.f32 0.0, %v707
            %v709 = vpop.f32.mrb[0].mxu0
            %710 = vmatprep.mubr.bf16.mxu0 0
            %711 = vmatmul.mubr.bf16.gmra.mrb[0].mxu0 %v500
            %v712 = vpop.f32.mrb[0].mxu0
            %v713 = vadd.f32 0.0, %v712
            %v714 = vpop.f32.mrb[0].mxu0
            %v715 = vpop.f32.mrb[0].mxu0
            %v716 = vadd.f32 0.0, %v715
            %v717 = vpop.f32.mrb[0].mxu0
            %718 = vmatprep.mubr.bf16.mxu0 0
            %719 = vmatmul.mubr.bf16.gmra.mrb[0].mxu0 %v501
            %v720 = vpop.f32.mrb[0].mxu0
            %v721 = vadd.f32 0.0, %v720
            %v722 = vpop.f32.mrb[0].mxu0
            %v723 = vpop.f32.mrb[0].mxu0
            %v724 = vadd.f32 0.0, %v723
            %v725 = vpop.f32.mrb[0].mxu0
            %726 = vdwg.mxu0
            %v727 = vpack.c.bf16 %v604, %v601
            %v728 = vpack.c.bf16 %v612, %v609
            %v729 = vpack.c.bf16 %v620, %v617
            %v730 = vpack.c.bf16 %v628, %v625
            %v731 = vpack.c.bf16 %v636, %v633
            %v732 = vpack.c.bf16 %v644, %v641
            %v733 = vpack.c.bf16 %v652, %v649
            %v734 = vpack.c.bf16 %v660, %v657
            %v735 = vpack.c.bf16 %v668, %v665
            %v736 = vpack.c.bf16 %v676, %v673
            %v737 = vpack.c.bf16 %v684, %v681
            %v738 = vpack.c.bf16 %v692, %v689
            %v739 = vpack.c.bf16 %v700, %v697
            %v740 = vpack.c.bf16 %v708, %v705
            %v741 = vpack.c.bf16 %v716, %v713
            %v742 = vpack.c.bf16 %v724, %v721
            %s743 = sshra.s32 %s353, 4
            %s744 = sand.u32 %s353, 15
            %s745 = smul.addr %s743, 8
            %s746 = scalar_lea.vmem [#allocation2], %s745
            %747 = vst [vmem:[%s746] sm:$0xff] %v727
            %748 = vst [vmem:[%s746 + $0x8] sm:$0xff] %v728
            %749 = vst [vmem:[%s746 + $0x10] sm:$0xff] %v729
            %750 = vst [vmem:[%s746 + $0x18] sm:$0xff] %v730
            %751 = vst [vmem:[%s746 + $0x20] sm:$0xff] %v731
            %752 = vst [vmem:[%s746 + $0x28] sm:$0xff] %v732
            %753 = vst [vmem:[%s746 + $0x30] sm:$0xff] %v733
            %754 = vst [vmem:[%s746 + $0x38] sm:$0xff] %v734
            %755 = vst [vmem:[%s746 + $0x40] sm:$0xff] %v735
            %756 = vst [vmem:[%s746 + $0x48] sm:$0xff] %v736
            %757 = vst [vmem:[%s746 + $0x50] sm:$0xff] %v737
            %758 = vst [vmem:[%s746 + $0x58] sm:$0xff] %v738
            %759 = vst [vmem:[%s746 + $0x60] sm:$0xff] %v739
            %760 = vst [vmem:[%s746 + $0x68] sm:$0xff] %v740
            %761 = vst [vmem:[%s746 + $0x70] sm:$0xff] %v741
            %762 = vst [vmem:[%s746 + $0x78] sm:$0xff] %v742
          $region80: #{tpu_custom_call.1} parent=75 // pred_fallthru
            _
          %p763 = scmp.eq.s32.totalorder %s29, 1
          // Predicated region
          $region81: #{tpu_custom_call.1} parent=75 // pred_check
            %p764 = pneg %p763
          $region82: #{tpu_custom_call.1} parent=75 // pred_check_branch
            %766 = sbr.rel (%p764) target = $region84
          $region83: #{tpu_custom_call.1} parent=75 // pred_region
            %s767 = sshra.s32 %s353, 4
            %s768 = sand.u32 %s353, 15
            %s769 = smul.addr %s767, 8
            %s770 = scalar_lea.vmem [#allocation3], %s769
            %v771 = vld [vmem:[%s770] sm:$0xff]
            %v772 = vld [vmem:[%s770 + $0x8] sm:$0xff]
            %v773 = vld [vmem:[%s770 + $0x10] sm:$0xff]
            %v774 = vld [vmem:[%s770 + $0x18] sm:$0xff]
            %v775 = vld [vmem:[%s770 + $0x20] sm:$0xff]
            %v776 = vld [vmem:[%s770 + $0x28] sm:$0xff]
            %v777 = vld [vmem:[%s770 + $0x30] sm:$0xff]
            %v778 = vld [vmem:[%s770 + $0x38] sm:$0xff]
            %v779 = vld [vmem:[%s770 + $0x40] sm:$0xff]
            %v780 = vld [vmem:[%s770 + $0x48] sm:$0xff]
            %v781 = vld [vmem:[%s770 + $0x50] sm:$0xff]
            %v782 = vld [vmem:[%s770 + $0x58] sm:$0xff]
            %v783 = vld [vmem:[%s770 + $0x60] sm:$0xff]
            %v784 = vld [vmem:[%s770 + $0x68] sm:$0xff]
            %v785 = vld [vmem:[%s770 + $0x70] sm:$0xff]
            %v786 = vld [vmem:[%s770 + $0x78] sm:$0xff]
            %v787 = vld [vmem:[#allocation13] sm:$0xf]
            %v788 = vld [vmem:[#allocation13 + $0x4] sm:$0xf]
            %v789 = vld [vmem:[#allocation13 + $0x8] sm:$0xf]
            %v790 = vld [vmem:[#allocation13 + $0xc] sm:$0xf]
            %v791 = vld [vmem:[#allocation13 + $0x10] sm:$0xf]
            %v792 = vld [vmem:[#allocation13 + $0x14] sm:$0xf]
            %v793 = vld [vmem:[#allocation13 + $0x18] sm:$0xf]
            %v794 = vld [vmem:[#allocation13 + $0x1c] sm:$0xf]
            %v795 = vld [vmem:[#allocation13 + $0x20] sm:$0xf]
            %v796 = vld [vmem:[#allocation13 + $0x24] sm:$0xf]
            %v797 = vld [vmem:[#allocation13 + $0x28] sm:$0xf]
            %v798 = vld [vmem:[#allocation13 + $0x2c] sm:$0xf]
            %v799 = vld [vmem:[#allocation13 + $0x30] sm:$0xf]
            %v800 = vld [vmem:[#allocation13 + $0x34] sm:$0xf]
            %v801 = vld [vmem:[#allocation13 + $0x38] sm:$0xf]
            %v802 = vld [vmem:[#allocation13 + $0x3c] sm:$0xf]
            %v819 = vunpack.c.l.b16 %v787
            %v820 = vunpack.c.l.b16 %v788
            %v821 = vunpack.c.l.b16 %v789
            %v822 = vunpack.c.l.b16 %v790
            %v823 = vunpack.c.l.b16 %v791
            %v824 = vunpack.c.l.b16 %v792
            %v825 = vunpack.c.l.b16 %v793
            %v826 = vunpack.c.l.b16 %v794
            %v827 = vunpack.c.l.b16 %v795
            %v828 = vunpack.c.l.b16 %v796
            %v829 = vunpack.c.l.b16 %v797
            %v830 = vunpack.c.l.b16 %v798
            %v831 = vunpack.c.l.b16 %v799
            %v832 = vunpack.c.l.b16 %v800
            %v833 = vunpack.c.l.b16 %v801
            %v834 = vunpack.c.l.b16 %v802
            %v835 = vpack.c.b16 %v820, %v819
            %v836 = vpack.c.b16 %v822, %v821
            %v837 = vpack.c.b16 %v824, %v823
            %v838 = vpack.c.b16 %v826, %v825
            %v839 = vpack.c.b16 %v828, %v827
            %v840 = vpack.c.b16 %v830, %v829
            %v841 = vpack.c.b16 %v832, %v831
            %v842 = vpack.c.b16 %v834, %v833
            %851 = vmatprep.subr.bf16.mxu0 0
            %852 = vmatpush1.bf16.msra.mxu0 %v835
            %853 = vmatprep.subr.bf16.mxu0 0
            %854 = vmatpush1.bf16.msra.mxu0 %v836
            %855 = vmatprep.subr.bf16.mxu0 0
            %856 = vmatpush1.bf16.msra.mxu0 %v837
            %857 = vmatprep.subr.bf16.mxu0 0
            %858 = vmatpush1.bf16.msra.mxu0 %v838
            %859 = vmatprep.subr.bf16.mxu0 0
            %860 = vmatpush1.bf16.msra.mxu0 %v839
            %861 = vmatprep.subr.bf16.mxu0 0
            %862 = vmatpush1.bf16.msra.mxu0 %v840
            %863 = vmatprep.subr.bf16.mxu0 0
            %864 = vmatpush1.bf16.msra.mxu0 %v841
            %865 = vmatprep.subr.bf16.mxu0 0
            %866 = vmatpush1.bf16.msra.mxu0 %v842
            %867 = vmatprep.subr.bf16.mxu0 0
            %868 = vmatpush1.bf16.msra.mxu0 0
            %869 = vmatprep.subr.bf16.mxu0 0
            %870 = vmatpush1.bf16.msra.mxu0 0
            %871 = vmatprep.subr.bf16.mxu0 0
            %872 = vmatpush1.bf16.msra.mxu0 0
            %873 = vmatprep.subr.bf16.mxu0 0
            %874 = vmatpush1.bf16.msra.mxu0 0
            %875 = vmatprep.subr.bf16.mxu0 0
            %876 = vmatpush1.bf16.msra.mxu0 0
            %877 = vmatprep.subr.bf16.mxu0 0
            %878 = vmatpush1.bf16.msra.mxu0 0
            %879 = vmatprep.subr.bf16.mxu0 0
            %880 = vmatpush1.bf16.msra.mxu0 0
            %881 = vmatprep.subr.bf16.mxu0 0
            %882 = vmatpush1.bf16.msra.mxu0 0
            %883 = vmatprep.mubr.bf16.mxu0 0
            %884 = vmatmul.mubr.bf16.gmra.mrb[0].mxu0 %v771
            %v885 = vpop.f32.mrb[0].mxu0
            %v886 = vadd.f32 0.0, %v885
            %v887 = vpop.f32.mrb[0].mxu0
            %v888 = vpop.f32.mrb[0].mxu0
            %v889 = vadd.f32 0.0, %v888
            %v890 = vpop.f32.mrb[0].mxu0
            %891 = vmatprep.mubr.bf16.mxu0 0
            %892 = vmatmul.mubr.bf16.gmra.mrb[0].mxu0 %v772
            %v893 = vpop.f32.mrb[0].mxu0
            %v894 = vadd.f32 0.0, %v893
            %v895 = vpop.f32.mrb[0].mxu0
            %v896 = vpop.f32.mrb[0].mxu0
            %v897 = vadd.f32 0.0, %v896
            %v898 = vpop.f32.mrb[0].mxu0
            %899 = vmatprep.mubr.bf16.mxu0 0
            %900 = vmatmul.mubr.bf16.gmra.mrb[0].mxu0 %v773
            %v901 = vpop.f32.mrb[0].mxu0
            %v902 = vadd.f32 0.0, %v901
            %v903 = vpop.f32.mrb[0].mxu0
            %v904 = vpop.f32.mrb[0].mxu0
            %v905 = vadd.f32 0.0, %v904
            %v906 = vpop.f32.mrb[0].mxu0
            %907 = vmatprep.mubr.bf16.mxu0 0
            %908 = vmatmul.mubr.bf16.gmra.mrb[0].mxu0 %v774
            %v909 = vpop.f32.mrb[0].mxu0
            %v910 = vadd.f32 0.0, %v909
            %v911 = vpop.f32.mrb[0].mxu0
            %v912 = vpop.f32.mrb[0].mxu0
            %v913 = vadd.f32 0.0, %v912
            %v914 = vpop.f32.mrb[0].mxu0
            %915 = vmatprep.mubr.bf16.mxu0 0
            %916 = vmatmul.mubr.bf16.gmra.mrb[0].mxu0 %v775
            %v917 = vpop.f32.mrb[0].mxu0
            %v918 = vadd.f32 0.0, %v917
            %v919 = vpop.f32.mrb[0].mxu0
            %v920 = vpop.f32.mrb[0].mxu0
            %v921 = vadd.f32 0.0, %v920
            %v922 = vpop.f32.mrb[0].mxu0
            %923 = vmatprep.mubr.bf16.mxu0 0
            %924 = vmatmul.mubr.bf16.gmra.mrb[0].mxu0 %v776
            %v925 = vpop.f32.mrb[0].mxu0
            %v926 = vadd.f32 0.0, %v925
            %v927 = vpop.f32.mrb[0].mxu0
            %v928 = vpop.f32.mrb[0].mxu0
            %v929 = vadd.f32 0.0, %v928
            %v930 = vpop.f32.mrb[0].mxu0
            %931 = vmatprep.mubr.bf16.mxu0 0
            %932 = vmatmul.mubr.bf16.gmra.mrb[0].mxu0 %v777
            %v933 = vpop.f32.mrb[0].mxu0
            %v934 = vadd.f32 0.0, %v933
            %v935 = vpop.f32.mrb[0].mxu0
            %v936 = vpop.f32.mrb[0].mxu0
            %v937 = vadd.f32 0.0, %v936
            %v938 = vpop.f32.mrb[0].mxu0
            %939 = vmatprep.mubr.bf16.mxu0 0
            %940 = vmatmul.mubr.bf16.gmra.mrb[0].mxu0 %v778
            %v941 = vpop.f32.mrb[0].mxu0
            %v942 = vadd.f32 0.0, %v941
            %v943 = vpop.f32.mrb[0].mxu0
            %v944 = vpop.f32.mrb[0].mxu0
            %v945 = vadd.f32 0.0, %v944
            %v946 = vpop.f32.mrb[0].mxu0
            %947 = vmatprep.mubr.bf16.mxu0 0
            %948 = vmatmul.mubr.bf16.gmra.mrb[0].mxu0 %v779
            %v949 = vpop.f32.mrb[0].mxu0
            %v950 = vadd.f32 0.0, %v949
            %v951 = vpop.f32.mrb[0].mxu0
            %v952 = vpop.f32.mrb[0].mxu0
            %v953 = vadd.f32 0.0, %v952
            %v954 = vpop.f32.mrb[0].mxu0
            %955 = vmatprep.mubr.bf16.mxu0 0
            %956 = vmatmul.mubr.bf16.gmra.mrb[0].mxu0 %v780
            %v957 = vpop.f32.mrb[0].mxu0
            %v958 = vadd.f32 0.0, %v957
            %v959 = vpop.f32.mrb[0].mxu0
            %v960 = vpop.f32.mrb[0].mxu0
            %v961 = vadd.f32 0.0, %v960
            %v962 = vpop.f32.mrb[0].mxu0
            %963 = vmatprep.mubr.bf16.mxu0 0
            %964 = vmatmul.mubr.bf16.gmra.mrb[0].mxu0 %v781
            %v965 = vpop.f32.mrb[0].mxu0
            %v966 = vadd.f32 0.0, %v965
            %v967 = vpop.f32.mrb[0].mxu0
            %v968 = vpop.f32.mrb[0].mxu0
            %v969 = vadd.f32 0.0, %v968
            %v970 = vpop.f32.mrb[0].mxu0
            %971 = vmatprep.mubr.bf16.mxu0 0
            %972 = vmatmul.mubr.bf16.gmra.mrb[0].mxu0 %v782
            %v973 = vpop.f32.mrb[0].mxu0
            %v974 = vadd.f32 0.0, %v973
            %v975 = vpop.f32.mrb[0].mxu0
            %v976 = vpop.f32.mrb[0].mxu0
            %v977 = vadd.f32 0.0, %v976
            %v978 = vpop.f32.mrb[0].mxu0
            %979 = vmatprep.mubr.bf16.mxu0 0
            %980 = vmatmul.mubr.bf16.gmra.mrb[0].mxu0 %v783
            %v981 = vpop.f32.mrb[0].mxu0
            %v982 = vadd.f32 0.0, %v981
            %v983 = vpop.f32.mrb[0].mxu0
            %v984 = vpop.f32.mrb[0].mxu0
            %v985 = vadd.f32 0.0, %v984
            %v986 = vpop.f32.mrb[0].mxu0
            %987 = vmatprep.mubr.bf16.mxu0 0
            %988 = vmatmul.mubr.bf16.gmra.mrb[0].mxu0 %v784
            %v989 = vpop.f32.mrb[0].mxu0
            %v990 = vadd.f32 0.0, %v989
            %v991 = vpop.f32.mrb[0].mxu0
            %v992 = vpop.f32.mrb[0].mxu0
            %v993 = vadd.f32 0.0, %v992
            %v994 = vpop.f32.mrb[0].mxu0
            %995 = vmatprep.mubr.bf16.mxu0 0
            %996 = vmatmul.mubr.bf16.gmra.mrb[0].mxu0 %v785
            %v997 = vpop.f32.mrb[0].mxu0
            %v998 = vadd.f32 0.0, %v997
            %v999 = vpop.f32.mrb[0].mxu0
            %v1000 = vpop.f32.mrb[0].mxu0
            %v1001 = vadd.f32 0.0, %v1000
            %v1002 = vpop.f32.mrb[0].mxu0
            %1003 = vmatprep.mubr.bf16.mxu0 0
            %1004 = vmatmul.mubr.bf16.gmra.mrb[0].mxu0 %v786
            %v1005 = vpop.f32.mrb[0].mxu0
            %v1006 = vadd.f32 0.0, %v1005
            %v1007 = vpop.f32.mrb[0].mxu0
            %v1008 = vpop.f32.mrb[0].mxu0
            %v1009 = vadd.f32 0.0, %v1008
            %v1010 = vpop.f32.mrb[0].mxu0
            %1011 = vdwg.mxu0
            %v1012 = vpack.c.bf16 %v889, %v886
            %v1013 = vpack.c.bf16 %v897, %v894
            %v1014 = vpack.c.bf16 %v905, %v902
            %v1015 = vpack.c.bf16 %v913, %v910
            %v1016 = vpack.c.bf16 %v921, %v918
            %v1017 = vpack.c.bf16 %v929, %v926
            %v1018 = vpack.c.bf16 %v937, %v934
            %v1019 = vpack.c.bf16 %v945, %v942
            %v1020 = vpack.c.bf16 %v953, %v950
            %v1021 = vpack.c.bf16 %v961, %v958
            %v1022 = vpack.c.bf16 %v969, %v966
            %v1023 = vpack.c.bf16 %v977, %v974
            %v1024 = vpack.c.bf16 %v985, %v982
            %v1025 = vpack.c.bf16 %v993, %v990
            %v1026 = vpack.c.bf16 %v1001, %v998
            %v1027 = vpack.c.bf16 %v1009, %v1006
            %s1028 = smul.addr %s767, 8
            %s1029 = scalar_lea.vmem [#allocation2], %s1028
            %1030 = vst [vmem:[%s1029] sm:$0xff] %v1012
            %1031 = vst [vmem:[%s1029 + $0x8] sm:$0xff] %v1013
            %1032 = vst [vmem:[%s1029 + $0x10] sm:$0xff] %v1014
            %1033 = vst [vmem:[%s1029 + $0x18] sm:$0xff] %v1015
            %1034 = vst [vmem:[%s1029 + $0x20] sm:$0xff] %v1016
            %1035 = vst [vmem:[%s1029 + $0x28] sm:$0xff] %v1017
            %1036 = vst [vmem:[%s1029 + $0x30] sm:$0xff] %v1018
            %1037 = vst [vmem:[%s1029 + $0x38] sm:$0xff] %v1019
            %1038 = vst [vmem:[%s1029 + $0x40] sm:$0xff] %v1020
            %1039 = vst [vmem:[%s1029 + $0x48] sm:$0xff] %v1021
            %1040 = vst [vmem:[%s1029 + $0x50] sm:$0xff] %v1022
            %1041 = vst [vmem:[%s1029 + $0x58] sm:$0xff] %v1023
            %1042 = vst [vmem:[%s1029 + $0x60] sm:$0xff] %v1024
            %1043 = vst [vmem:[%s1029 + $0x68] sm:$0xff] %v1025
            %1044 = vst [vmem:[%s1029 + $0x70] sm:$0xff] %v1026
            %1045 = vst [vmem:[%s1029 + $0x78] sm:$0xff] %v1027
          $region84: #{tpu_custom_call.1} parent=75 // pred_fallthru
            _
        $region76: #{tpu_custom_call.1} parent=51 // pred_fallthru
          _
        // Predicated region
        $region85: #{tpu_custom_call.1} parent=51 // pred_check
          %p1046 = pneg %p358
        $region86: #{tpu_custom_call.1} parent=51 // pred_check_branch
          %1048 = sbr.rel (%p1046) target = $region88
        $region87: #{tpu_custom_call.1} parent=51 // pred_region
          %1049 = vst [vmem:[#allocation4] sm:$0xff] 0.0
          %1050 = vst [vmem:[#allocation4 + $0x8] sm:$0xff] 0.0
          %1051 = vst [vmem:[#allocation4 + $0x10] sm:$0xff] 0.0
          %1052 = vst [vmem:[#allocation4 + $0x18] sm:$0xff] 0.0
          %1053 = vst [vmem:[#allocation4 + $0x20] sm:$0xff] 0.0
          %1054 = vst [vmem:[#allocation4 + $0x28] sm:$0xff] 0.0
          %1055 = vst [vmem:[#allocation4 + $0x30] sm:$0xff] 0.0
          %1056 = vst [vmem:[#allocation4 + $0x38] sm:$0xff] 0.0
        $region88: #{tpu_custom_call.1} parent=51 // pred_fallthru
          _
        %s1057 = sshra.s32 %s352, 3
        %s1058 = sand.u32 %s352, 7
        %s1059 = smul.u32 %s1057, 2
        %s1060 = smul.addr %s1059, 4
        %s1061 = scalar_lea.vmem [#allocation7], %s1060
        %v1062 = vld [vmem:[%s1061] sm:$0xff]
        %v1063 = vld [vmem:[%s1061 + $0x8] sm:$0xff]
        %v1064 = vld [vmem:[%s1061 + $0x10] sm:$0xff]
        %v1065 = vld [vmem:[%s1061 + $0x18] sm:$0xff]
        %v1066 = vld [vmem:[%s1061 + $0x20] sm:$0xff]
        %v1067 = vld [vmem:[%s1061 + $0x28] sm:$0xff]
        %v1068 = vld [vmem:[%s1061 + $0x30] sm:$0xff]
        %v1069 = vld [vmem:[%s1061 + $0x38] sm:$0xff]
        %v1070 = vld [vmem:[#allocation4] sm:$0xff]
        %v1071 = vld [vmem:[#allocation4 + $0x8] sm:$0xff]
        %v1072 = vld [vmem:[#allocation4 + $0x10] sm:$0xff]
        %v1073 = vld [vmem:[#allocation4 + $0x18] sm:$0xff]
        %v1074 = vld [vmem:[#allocation4 + $0x20] sm:$0xff]
        %v1075 = vld [vmem:[#allocation4 + $0x28] sm:$0xff]
        %v1076 = vld [vmem:[#allocation4 + $0x30] sm:$0xff]
        %v1077 = vld [vmem:[#allocation4 + $0x38] sm:$0xff]
        %s1078 = sshra.s32 %s353, 4
        %s1079 = sand.u32 %s353, 15
        %s1080 = smul.addr %s1078, 8
        %s1081 = scalar_lea.vmem [#allocation2], %s1080
        %v1082 = vld [vmem:[%s1081] sm:$0xff]
        %v1083 = vld [vmem:[%s1081 + $0x8] sm:$0xff]
        %v1084 = vld [vmem:[%s1081 + $0x10] sm:$0xff]
        %v1085 = vld [vmem:[%s1081 + $0x18] sm:$0xff]
        %v1086 = vld [vmem:[%s1081 + $0x20] sm:$0xff]
        %v1087 = vld [vmem:[%s1081 + $0x28] sm:$0xff]
        %v1088 = vld [vmem:[%s1081 + $0x30] sm:$0xff]
        %v1089 = vld [vmem:[%s1081 + $0x38] sm:$0xff]
        %v1090 = vld [vmem:[%s1081 + $0x40] sm:$0xff]
        %v1091 = vld [vmem:[%s1081 + $0x48] sm:$0xff]
        %v1092 = vld [vmem:[%s1081 + $0x50] sm:$0xff]
        %v1093 = vld [vmem:[%s1081 + $0x58] sm:$0xff]
        %v1094 = vld [vmem:[%s1081 + $0x60] sm:$0xff]
        %v1095 = vld [vmem:[%s1081 + $0x68] sm:$0xff]
        %v1096 = vld [vmem:[%s1081 + $0x70] sm:$0xff]
        %v1097 = vld [vmem:[%s1081 + $0x78] sm:$0xff]
        %v1106 = vunpack.c.l.b16 %v1062
        %v1107 = vunpack.c.h.b16 %v1062
        %v1108 = vunpack.c.l.b16 %v1063
        %v1109 = vunpack.c.h.b16 %v1063
        %v1110 = vunpack.c.l.b16 %v1064
        %v1111 = vunpack.c.h.b16 %v1064
        %v1112 = vunpack.c.l.b16 %v1065
        %v1113 = vunpack.c.h.b16 %v1065
        %v1114 = vunpack.c.l.b16 %v1066
        %v1115 = vunpack.c.h.b16 %v1066
        %v1116 = vunpack.c.l.b16 %v1067
        %v1117 = vunpack.c.h.b16 %v1067
        %v1118 = vunpack.c.l.b16 %v1068
        %v1119 = vunpack.c.h.b16 %v1068
        %v1120 = vunpack.c.l.b16 %v1069
        %v1121 = vunpack.c.h.b16 %v1069
        %v1122 = vpack.c.b16 %v1108, %v1106
        %v1123 = vpack.c.b16 %v1109, %v1107
        %v1124 = vpack.c.b16 %v1112, %v1110
        %v1125 = vpack.c.b16 %v1113, %v1111
        %v1126 = vpack.c.b16 %v1116, %v1114
        %v1127 = vpack.c.b16 %v1117, %v1115
        %v1128 = vpack.c.b16 %v1120, %v1118
        %v1129 = vpack.c.b16 %v1121, %v1119
        %1138 = vmatprep.subr.bf16.mxu0 0
        %1139 = vmatpush1.bf16.msra.mxu0 %v1082
        %1140 = vmatprep.subr.bf16.mxu0 0
        %1141 = vmatpush1.bf16.msra.mxu0 %v1083
        %1142 = vmatprep.subr.bf16.mxu0 0
        %1143 = vmatpush1.bf16.msra.mxu0 %v1084
        %1144 = vmatprep.subr.bf16.mxu0 0
        %1145 = vmatpush1.bf16.msra.mxu0 %v1085
        %1146 = vmatprep.subr.bf16.mxu0 0
        %1147 = vmatpush1.bf16.msra.mxu0 %v1086
        %1148 = vmatprep.subr.bf16.mxu0 0
        %1149 = vmatpush1.bf16.msra.mxu0 %v1087
        %1150 = vmatprep.subr.bf16.mxu0 0
        %1151 = vmatpush1.bf16.msra.mxu0 %v1088
        %1152 = vmatprep.subr.bf16.mxu0 0
        %1153 = vmatpush1.bf16.msra.mxu0 %v1089
        %1154 = vmatprep.subr.bf16.mxu0 0
        %1155 = vmatpush1.bf16.msra.mxu0 %v1090
        %1156 = vmatprep.subr.bf16.mxu0 0
        %1157 = vmatpush1.bf16.msra.mxu0 %v1091
        %1158 = vmatprep.subr.bf16.mxu0 0
        %1159 = vmatpush1.bf16.msra.mxu0 %v1092
        %1160 = vmatprep.subr.bf16.mxu0 0
        %1161 = vmatpush1.bf16.msra.mxu0 %v1093
        %1162 = vmatprep.subr.bf16.mxu0 0
        %1163 = vmatpush1.bf16.msra.mxu0 %v1094
        %1164 = vmatprep.subr.bf16.mxu0 0
        %1165 = vmatpush1.bf16.msra.mxu0 %v1095
        %1166 = vmatprep.subr.bf16.mxu0 0
        %1167 = vmatpush1.bf16.msra.mxu0 %v1096
        %1168 = vmatprep.subr.bf16.mxu0 0
        %1169 = vmatpush1.bf16.msra.mxu0 %v1097
        %1170 = vmatprep.mubr.bf16.mxu0 %v1123
        %1171 = vmatmul.mubr.bf16.gmra.mrb[0].mxu0 %v1122
        %v1172 = vpop.f32.mrb[0].mxu0
        %v1173 = vadd.f32 0.0, %v1172
        %v1174 = vpop.f32.mrb[0].mxu0
        %v1175 = vpop.f32.mrb[0].mxu0
        %v1176 = vadd.f32 0.0, %v1175
        %v1177 = vpop.f32.mrb[0].mxu0
        %1178 = vmatprep.mubr.bf16.mxu0 %v1125
        %1179 = vmatmul.mubr.bf16.gmra.mrb[0].mxu0 %v1124
        %v1180 = vpop.f32.mrb[0].mxu0
        %v1181 = vadd.f32 0.0, %v1180
        %v1182 = vpop.f32.mrb[0].mxu0
        %v1183 = vpop.f32.mrb[0].mxu0
        %v1184 = vadd.f32 0.0, %v1183
        %v1185 = vpop.f32.mrb[0].mxu0
        %1186 = vmatprep.mubr.bf16.mxu0 %v1127
        %1187 = vmatmul.mubr.bf16.gmra.mrb[0].mxu0 %v1126
        %v1188 = vpop.f32.mrb[0].mxu0
        %v1189 = vadd.f32 0.0, %v1188
        %v1190 = vpop.f32.mrb[0].mxu0
        %v1191 = vpop.f32.mrb[0].mxu0
        %v1192 = vadd.f32 0.0, %v1191
        %v1193 = vpop.f32.mrb[0].mxu0
        %1194 = vmatprep.mubr.bf16.mxu0 %v1129
        %1195 = vmatmul.mubr.bf16.gmra.mrb[0].mxu0 %v1128
        %v1196 = vpop.f32.mrb[0].mxu0
        %v1197 = vadd.f32 0.0, %v1196
        %v1198 = vpop.f32.mrb[0].mxu0
        %v1199 = vpop.f32.mrb[0].mxu0
        %v1200 = vadd.f32 0.0, %v1199
        %v1201 = vpop.f32.mrb[0].mxu0
        %1202 = vdwg.mxu0
        %v1203 = vadd.f32 %v1070, %v1173
        %v1204 = vadd.f32 %v1071, %v1176
        %v1205 = vadd.f32 %v1072, %v1181
        %v1206 = vadd.f32 %v1073, %v1184
        %v1207 = vadd.f32 %v1074, %v1189
        %v1208 = vadd.f32 %v1075, %v1192
        %v1209 = vadd.f32 %v1076, %v1197
        %v1210 = vadd.f32 %v1077, %v1200
        %1211 = vst [vmem:[#allocation4] sm:$0xff] %v1203
        %1212 = vst [vmem:[#allocation4 + $0x8] sm:$0xff] %v1204
        %1213 = vst [vmem:[#allocation4 + $0x10] sm:$0xff] %v1205
        %1214 = vst [vmem:[#allocation4 + $0x18] sm:$0xff] %v1206
        %1215 = vst [vmem:[#allocation4 + $0x20] sm:$0xff] %v1207
        %1216 = vst [vmem:[#allocation4 + $0x28] sm:$0xff] %v1208
        %1217 = vst [vmem:[#allocation4 + $0x30] sm:$0xff] %v1209
        %1218 = vst [vmem:[#allocation4 + $0x38] sm:$0xff] %v1210
        // Predicated region
        $region89: #{tpu_custom_call.1} parent=51 // pred_check
          %p1219 = pneg %p358
        $region90: #{tpu_custom_call.1} parent=51 // pred_check_branch
          %1221 = sbr.rel (%p1219) target = $region92
        $region91: #{tpu_custom_call.1} parent=51 // pred_region
          // Predicated region
          $region93: #{tpu_custom_call.1} parent=91 // pred_check
            %p1222 = pneg %p354
          $region94: #{tpu_custom_call.1} parent=91 // pred_check_branch
            %1224 = sbr.rel (%p1222) target = $region96
          $region95: #{tpu_custom_call.1} parent=91 // pred_region
            %v1225 = vld [vmem:[#allocation4] sm:$0xff]
            %v1226 = vld [vmem:[#allocation4 + $0x8] sm:$0xff]
            %v1227 = vld [vmem:[#allocation4 + $0x10] sm:$0xff]
            %v1228 = vld [vmem:[#allocation4 + $0x18] sm:$0xff]
            %v1229 = vld [vmem:[#allocation4 + $0x20] sm:$0xff]
            %v1230 = vld [vmem:[#allocation4 + $0x28] sm:$0xff]
            %v1231 = vld [vmem:[#allocation4 + $0x30] sm:$0xff]
            %v1232 = vld [vmem:[#allocation4 + $0x38] sm:$0xff]
            %v1233 = vld [vmem:[%s3] sm:$0x1]
            %v1235 = vlaneseq
            %v1236 = vshrl.u32 %v1235, 7
            %v1237 = vsub.s32 0, %v1236
            %v1238 = vrot.slane %v1233, %v1237
            %v1240 = vadd.f32 %v1225, %v1238
            %v1241 = vadd.f32 %v1226, %v1238
            %v1242 = vadd.f32 %v1227, %v1238
            %v1243 = vadd.f32 %v1228, %v1238
            %v1244 = vadd.f32 %v1229, %v1238
            %v1245 = vadd.f32 %v1230, %v1238
            %v1246 = vadd.f32 %v1231, %v1238
            %v1247 = vadd.f32 %v1232, %v1238
            %v1248 = vmax.f32 %v1240, 0.0
            %v1249 = vmax.f32 %v1241, 0.0
            %v1250 = vmax.f32 %v1242, 0.0
            %v1251 = vmax.f32 %v1243, 0.0
            %v1252 = vmax.f32 %v1244, 0.0
            %v1253 = vmax.f32 %v1245, 0.0
            %v1254 = vmax.f32 %v1246, 0.0
            %v1255 = vmax.f32 %v1247, 0.0
            %v1256 = vpack.c.bf16 %v1249, %v1248
            %v1257 = vpack.c.bf16 %v1251, %v1250
            %v1258 = vpack.c.bf16 %v1253, %v1252
            %v1259 = vpack.c.bf16 %v1255, %v1254
            %s1260 = sshra.s32 %s352, 4
            %s1261 = sand.u32 %s352, 15
            %s1262 = smul.addr %s1260, 8
            %s1263 = scalar_lea.vmem [#allocation3], %s1262
            %1264 = vst [vmem:[%s1263] sm:$0xff] %v1256
            %1265 = vst [vmem:[%s1263 + $0x8] sm:$0xff] %v1257
            %1266 = vst [vmem:[%s1263 + $0x10] sm:$0xff] %v1258
            %1267 = vst [vmem:[%s1263 + $0x18] sm:$0xff] %v1259
          $region96: #{tpu_custom_call.1} parent=91 // pred_fallthru
            _
          %p1268 = scmp.eq.s32.totalorder %s29, 1
          // Predicated region
          $region97: #{tpu_custom_call.1} parent=91 // pred_check
            %p1269 = pneg %p1268
          $region98: #{tpu_custom_call.1} parent=91 // pred_check_branch
            %1271 = sbr.rel (%p1269) target = $region100
          $region99: #{tpu_custom_call.1} parent=91 // pred_region
            %v1272 = vld [vmem:[#allocation4] sm:$0xff]
            %v1273 = vld [vmem:[#allocation4 + $0x8] sm:$0xff]
            %v1274 = vld [vmem:[#allocation4 + $0x10] sm:$0xff]
            %v1275 = vld [vmem:[#allocation4 + $0x18] sm:$0xff]
            %v1276 = vld [vmem:[#allocation4 + $0x20] sm:$0xff]
            %v1277 = vld [vmem:[#allocation4 + $0x28] sm:$0xff]
            %v1278 = vld [vmem:[#allocation4 + $0x30] sm:$0xff]
            %v1279 = vld [vmem:[#allocation4 + $0x38] sm:$0xff]
            %v1280 = vld [vmem:[%s5] sm:$0x1]
            %v1282 = vlaneseq
            %v1283 = vshrl.u32 %v1282, 7
            %v1284 = vsub.s32 0, %v1283
            %v1285 = vrot.slane %v1280, %v1284
            %v1287 = vadd.f32 %v1272, %v1285
            %v1288 = vadd.f32 %v1273, %v1285
            %v1289 = vadd.f32 %v1274, %v1285
            %v1290 = vadd.f32 %v1275, %v1285
            %v1291 = vadd.f32 %v1276, %v1285
            %v1292 = vadd.f32 %v1277, %v1285
            %v1293 = vadd.f32 %v1278, %v1285
            %v1294 = vadd.f32 %v1279, %v1285
            %v1295 = vmax.f32 %v1287, 0.0
            %v1296 = vmax.f32 %v1288, 0.0
            %v1297 = vmax.f32 %v1289, 0.0
            %v1298 = vmax.f32 %v1290, 0.0
            %v1299 = vmax.f32 %v1291, 0.0
            %v1300 = vmax.f32 %v1292, 0.0
            %v1301 = vmax.f32 %v1293, 0.0
            %v1302 = vmax.f32 %v1294, 0.0
            %v1303 = vld [vmem:[#allocation5] sm:$0x1]
            %v1304 = vadd.f32 %v1295, %v1296
            %v1305 = vadd.f32 %v1304, %v1297
            %v1306 = vadd.f32 %v1305, %v1298
            %v1307 = vadd.f32 %v1306, %v1299
            %v1308 = vadd.f32 %v1307, %v1300
            %v1309 = vadd.f32 %v1308, %v1301
            %v1310 = vadd.f32 %v1309, %v1302
            %v1311 = vrot.slane %v1310, 4
            %v1312 = vadd.f32 %v1310, %v1311
            %v1313 = vrot.slane %v1312, 2
            %v1314 = vadd.f32 %v1312, %v1313
            %v1315 = vrot.slane %v1314, 1
            %v1316 = vadd.f32 %v1314, %v1315
            %v1317 = vadd.f32 %v1303, %v1316
            %1318 = vst [vmem:[#allocation5] sm:$0x1] %v1317
            %p1319 = scmp.eq.s32.totalorder %s30, 3
            // Predicated region
            $region101: #{tpu_custom_call.1} parent=99 // pred_check
              %p1320 = pneg %p1319
            $region102: #{tpu_custom_call.1} parent=99 // pred_check_branch
              %1322 = sbr.rel (%p1320) target = $region104
            $region103: #{tpu_custom_call.1} parent=99 // pred_region
              %v1323 = vld [vmem:[#allocation5] sm:$0x1]
              %v1324 = vmul.f32 %v1323, 0.00390625
              %v1325 = vld [vmem:[%s6] sm:$0x1]
              %v1326 = vmul.f32 %v1324, %v1325
              %vm1327 = vcmask 1040384
              %v1328 = vsel %vm1327, %v1326, 0.0
              %1329 = vadd.xlane.f32.xlu0 %v1328
              %v1330 = vpop.xlane.xlu0 %1329
              %s1331 = sld [smem:[#allocation6]]
              %v1332 = vstv %s1331
              %v1333 = vadd.f32 %v1330, %v1332
              %1334 = vst [vmem:[#allocation15] sm:$0x1] %v1333
            $region104: #{tpu_custom_call.1} parent=99 // pred_fallthru
              _
          $region100: #{tpu_custom_call.1} parent=91 // pred_fallthru
            _
        $region92: #{tpu_custom_call.1} parent=51 // pred_fallthru
          _
        // Predicated region
        $region105: #{tpu_custom_call.1} parent=51 // pred_check
          %p1335 = pneg %p224
        $region106: #{tpu_custom_call.1} parent=51 // pred_check_branch
          %1337 = sbr.rel (%p1335) target = $region108
        $region107: #{tpu_custom_call.1} parent=51 // pred_region
          %s1339 = ssub.s32 16, 16
          %1340 = vsyncadd [#allocation9], %s1339
          %s1342 = sshll.u32 [#allocation15], 4
          %s1343 = int_to_ptr.vmem [resolvable:$true] %s1342
          %1345 = dma.vmem_to_hbm [thread:$0]  %s1343, 16, %s8, [#allocation9]
        $region108: #{tpu_custom_call.1} parent=51 // pred_fallthru
          _
        // Predicated region
        $region109: #{tpu_custom_call.1} parent=51 // pred_check
          %p1346 = pneg %p224
        $region110: #{tpu_custom_call.1} parent=51 // pred_check_branch
          %1348 = sbr.rel (%p1346) target = $region112
        $region111: #{tpu_custom_call.1} parent=51 // pred_region
          %1349 = dma.done [#allocation9], 16
        $region112: #{tpu_custom_call.1} parent=51 // pred_fallthru
          _
      $region52: #{tpu_custom_call.1} parent=5 // pred_fallthru
        _
      %p1350 = scmp.le.s32.totalorder 2, %s19
      // Predicated region
      $region113: #{tpu_custom_call.1} parent=5 // pred_check
        %p1351 = pneg %p1350
      $region114: #{tpu_custom_call.1} parent=5 // pred_check_branch
        %1353 = sbr.rel (%p1351) target = $region116
      $region115: #{tpu_custom_call.1} parent=5 // pred_region
        %s1354 = ssub.s32 %s19, 2
      $region116: #{tpu_custom_call.1} parent=5 // pred_fallthru
        _
    $region6: #{tpu_custom_call.1} parent=1 // loop_footer
      %s23 = sadd.s32 1, %s19
    $region7: #{tpu_custom_call.1} parent=1 // loop_footer_branch
      %18 = sbr.rel target = $region3
    $region8: #{tpu_custom_call.1} parent=1 // loop_exit
      _
    %1355 = vsyncpa [#allocation8], 1
    %s1356 = scalar_lea.sflag [#allocation8], 1
    %1357 = vsyncpa %s1356, 1
    %1358 = vsyncpa [#allocation11], 1
    %1359 = vsyncpa [#allocation14], 1
    %1360 = vsyncpa [#allocation9], 1
    %s1361 = scalar_lea.sflag [#allocation9], 1
    %1362 = vsyncpa %s1361, 1

</llo_original>
